<compile_context>
chip_gen: v7x
topology: tpu7x:2x2x1
jax: 0.10.0
libtpu: 0.0.40
codegen_flags: <defaults>
</compile_context>

<pallas_src>
import functools

import jax
import jax.numpy as jnp
from jax.experimental import pallas as pl
from jax.experimental.pallas import tpu as pltpu

PAD = 128  # lane-dense feature padding (one full vreg lane width)


# ----------------------------------------------------------------------------
# Fused forward kernel: the whole network in one kernel body.
# ----------------------------------------------------------------------------
def _fused_forward_kernel(x_ref, w_ref, b_ref, o_ref, *, n_res, n_mid, fin, n_split):
    """Whole-network forward for one batch tile.

    x_ref : (rows, fin)    f32   raw (un-padded) input tile
    w_ref : (L, PAD, PAD)  bf16  BN-folded, zero-padded weight slab
    b_ref : (L, 1,  PAD)   f32   BN-folded, zero-padded bias slab
    o_ref : (rows, PAD)    f32   padded logits (valid lanes: [:num_classes])

    Slab layer order:
      [0]               input Linear(+BN) -> ReLU
      [1+4r .. 4+4r]    residual block r: Lin1(+BN) ReLU, Lin2(+BN),
                        attn Lin1 ReLU, attn Lin2 Sigmoid,
                        then relu(out * gate + residual)
      [1+4*n_res ..]    n_mid middle Linear(+BN) -> ReLU
      [last]            output Linear (no activation)
    """
    rows = x_ref.shape[0]
    sub = rows // n_split

    def matmul(x, idx):
        # bf16 MXU operands, f32 accumulate; bias / elementwise stay f32.
        return (jnp.dot(x.astype(w_ref.dtype), w_ref[idx],
                        preferred_element_type=jnp.float32) + b_ref[idx])

    def lin(x, idx, act):
        y = matmul(x, idx)
        if act == "relu":
            y = jnp.maximum(y, 0.0)
        elif act == "sigmoid":
            # exp on EUP + approximate reciprocal (EUP) -> no VPU divide.
            y = pl.reciprocal(1.0 + jnp.exp(-y), approx=True)
        return y

    # Load the n_split independent row sub-tiles.  Every layer below is applied
    # to all sub-tiles before moving to the next layer, so sub-tile B's matmul
    # overlaps sub-tile A's epilogue / result drain.
    xin = [x_ref[pl.ds(s * sub, sub), :].astype(jnp.float32) for s in range(n_split)]

    # Input layer: dot against only the `fin` valid weight rows -- no wrapper
    # side lane padding of x, no wasted MXU work on zero K rows.  Padded output
    # lanes of w0 are zero, so all downstream padded lanes stay exactly zero.
    w0 = w_ref[0][:fin, :]
    xs = [
        jnp.maximum(
            jnp.dot(x.astype(w_ref.dtype), w0,
                    preferred_element_type=jnp.float32) + b_ref[0],
            0.0)
        for x in xin
    ]

    idx = 1
    for _ in range(n_res):                                    # residual blocks
        res = xs
        h = [lin(x, idx, "relu") for x in xs]; idx += 1       # Lin+BN+ReLU (Dropout=id)
        out = [lin(x, idx, "none") for x in h]; idx += 1      # Lin+BN
        g = [lin(x, idx, "relu") for x in out]; idx += 1      # attn Lin+ReLU
        g = [lin(x, idx, "sigmoid") for x in g]; idx += 1     # attn Lin+Sigmoid
        xs = [jnp.maximum(o * a + r, 0.0) for o, a, r in zip(out, g, res)]

    for _ in range(n_mid):                                    # middle layers
        xs = [lin(x, idx, "relu") for x in xs]; idx += 1

    for s in range(n_split):                                  # output layer
        o_ref[pl.ds(s * sub, sub), :] = lin(xs[s], idx, "none").astype(o_ref.dtype)


# ----------------------------------------------------------------------------
# Deterministic parameter construction + BN folding (plain-JAX glue)
# ----------------------------------------------------------------------------
def _init_linear(key, fin, fout, scale=0.1):
    kw, kb = jax.random.split(key)
    w = scale * jax.random.normal(kw, (fin, fout), jnp.float32)
    b = scale * jax.random.normal(kb, (fout,), jnp.float32)
    return w, b


def _init_bn(key, f):
    k1, k2, k3, k4 = jax.random.split(key, 4)
    gamma = 1.0 + 0.1 * jax.random.normal(k1, (f,), jnp.float32)
    beta = 0.1 * jax.random.normal(k2, (f,), jnp.float32)
    mean = 0.1 * jax.random.normal(k3, (f,), jnp.float32)
    var = 1.0 + 0.1 * jax.random.uniform(k4, (f,), jnp.float32)
    return gamma, beta, mean, var


def _fold_bn(w, b, bn, eps=1e-5):
    """Fold eval-mode BatchNorm1d into the preceding Linear."""
    gamma, beta, mean, var = bn
    scale = gamma / jnp.sqrt(var + eps)
    return w * scale[None, :], b * scale + beta - mean * scale


def build_params(key, input_size, hidden_sizes, num_classes):
    keys = iter(jax.random.split(key, 64))
    params = {}

    # input_layer: Linear -> BN -> ReLU -> Dropout
    w, b = _init_linear(next(keys), input_size, hidden_sizes[0])
    bn = _init_bn(next(keys), hidden_sizes[0])
    params["input"] = _fold_bn(w, b, bn)

    # two residual blocks on hidden_sizes[0]
    d = hidden_sizes[0]
    h = d // 2
    res_blocks = []
    for _ in range(2):
        w1, b1 = _init_linear(next(keys), d, h)
        bn1 = _init_bn(next(keys), h)
        w1, b1 = _fold_bn(w1, b1, bn1)
        w2, b2 = _init_linear(next(keys), h, d)
        bn2 = _init_bn(next(keys), d)
        w2, b2 = _fold_bn(w2, b2, bn2)
        aw1, ab1 = _init_linear(next(keys), d, d // 2)
        aw2, ab2 = _init_linear(next(keys), d // 2, d)
        res_blocks.append(
            dict(w1=w1, b1=b1, w2=w2, b2=b2, aw1=aw1, ab1=ab1, aw2=aw2, ab2=ab2)
        )
    params["res_blocks"] = res_blocks

    # middle layers: Linear -> BN -> ReLU -> Dropout
    middle = []
    for i in range(len(hidden_sizes) - 1):
        w, b = _init_linear(next(keys), hidden_sizes[i], hidden_sizes[i + 1])
        bn = _init_bn(next(keys), hidden_sizes[i + 1])
        middle.append(_fold_bn(w, b, bn))
    params["middle"] = middle

    # output layer
    params["output"] = _init_linear(next(keys), hidden_sizes[-1], num_classes)
    return params


# ----------------------------------------------------------------------------
# Weight packing: pad every Linear to a lane-dense (PAD, PAD) tile, stack, and
# cast the weight slab to bf16 (padding with exact zeros is done in f32 first,
# and zeros survive the bf16 cast exactly, so padded lanes stay exactly zero).
# ----------------------------------------------------------------------------
def _pad2(a, rows, cols):
    return jnp.zeros((rows, cols), a.dtype).at[: a.shape[0], : a.shape[1]].set(a)


def pack_params(params, pad=PAD):
    layers = [params["input"]]
    for blk in params["res_blocks"]:
        layers += [
            (blk["w1"], blk["b1"]),
            (blk["w2"], blk["b2"]),
            (blk["aw1"], blk["ab1"]),
            (blk["aw2"], blk["ab2"]),
        ]
    layers += list(params["middle"])
    layers.append(params["output"])

    for (w, _) in layers:
        # TODO(synk): full-size model (802-in / 512-hidden) needs K/N tiling
        # over multiple 128-wide slabs; this demo-size packer assumes <= PAD.
        assert w.shape[0] <= pad and w.shape[1] <= pad

    # bf16 weights for the MXU (f32 accumulate in-kernel); biases stay f32.
    # TODO(synk): fp8 weight storage on v7x not evaluated here.
    w_slab = jnp.stack([_pad2(w, pad, pad) for (w, _) in layers]).astype(jnp.bfloat16)
    b_slab = jnp.stack([_pad2(b.reshape(1, -1), 1, pad) for (_, b) in layers])
    return w_slab, b_slab  # (L,PAD,PAD) bf16, (L,1,PAD) f32


# ----------------------------------------------------------------------------
# Fused forward pass: one pallas_call for the whole model.
# ----------------------------------------------------------------------------
def rcs_forward_fused(params, x, num_classes, pad=PAD, batch_tile=512):
    w_slab, b_slab = pack_params(params, pad)
    n_res = len(params["res_blocks"])
    n_mid = len(params["middle"])

    x = x.astype(jnp.float32)
    B, fin = x.shape

    if B <= 128:
        # Small batch: no grid, whole operands resident in VMEM, single launch.
        kernel = functools.partial(
            _fused_forward_kernel, n_res=n_res, n_mid=n_mid, fin=fin, n_split=1)
        out = pl.pallas_call(
            kernel,
            out_shape=jax.ShapeDtypeStruct((B, pad), jnp.float32),
            in_specs=[pl.BlockSpec(memory_space=pltpu.MemorySpace.VMEM)] * 3,
            out_specs=pl.BlockSpec(memory_space=pltpu.MemorySpace.VMEM),
        )(x, w_slab, b_slab)
        return out[:, :num_classes]

    # Large batch: batch-tiled grid.  Shrink the tile (multiples of 128) until
    # there are >= 2 grid steps so both v7x TensorCores get work.
    tile = batch_tile
    while tile > 128 and -(-B // tile) < 2:
        tile //= 2
    num_tiles = -(-B // tile)
    b_padded = num_tiles * tile
    if b_padded != B:
        # Zero-pad the batch to a tile multiple (never fall back to a
        # whole-array-in-VMEM launch -- that is a v7x 64 MiB VMEM hazard).
        x = jnp.zeros((b_padded, fin), jnp.float32).at[:B, :].set(x)

    # Two row sub-tiles per grid step keep the MXU fed through each layer's
    # drain/epilogue; only worth it while each sub-tile still has >= 128 rows.
    n_split = 2 if tile >= 256 else 1

    kernel = functools.partial(
        _fused_forward_kernel, n_res=n_res, n_mid=n_mid, fin=fin, n_split=n_split)
    out = pl.pallas_call(
        kernel,
        out_shape=jax.ShapeDtypeStruct((b_padded, pad), jnp.float32),
        grid=(num_tiles,),
        in_specs=[
            pl.BlockSpec((tile, fin), lambda i: (i, 0)),
            # Constant index_map: the slabs are DMA'd once and kept resident
            # across grid steps (Pallas skips re-copies when the block index
            # does not change), so there is no per-step weight traffic.
            pl.BlockSpec(w_slab.shape, lambda i: (0, 0, 0)),
            pl.BlockSpec(b_slab.shape, lambda i: (0, 0, 0)),
        ],
        out_specs=pl.BlockSpec((tile, pad), lambda i: (i, 0)),
        compiler_params=pltpu.CompilerParams(
            # Independent batch steps -> megacore-shard across TensorCores.
            # vmem_limit left at the compiler default (working set ~1-2 MiB).
            dimension_semantics=("parallel",),
        ),
    )(x, w_slab, b_slab)
    return out[:B, :num_classes]


# ----------------------------------------------------------------------------
# Pure-JAX reference (unpadded, f32, exact sigmoid) for verification
# ----------------------------------------------------------------------------
def rcs_forward_ref(params, x):
    def lin(x, w, b, act):
        y = x @ w + b
        if act == "relu":
            y = jnp.maximum(y, 0.0)
        elif act == "sigmoid":
            y = jax.nn.sigmoid(y)
        return y

    w, b = params["input"]
    x = lin(x, w, b, "relu")
    for blk in params["res_blocks"]:
        residual = x
        h = lin(x, blk["w1"], blk["b1"], "relu")
        out = lin(h, blk["w2"], blk["b2"], "none")
        a = lin(out, blk["aw1"], blk["ab1"], "relu")
        a = lin(a, blk["aw2"], blk["ab2"], "sigmoid")
        x = jnp.maximum(out * a + residual, 0.0)
    for (w, b) in params["middle"]:
        x = lin(x, w, b, "relu")
    w, b = params["output"]
    return lin(x, w, b, "none")


# ----------------------------------------------------------------------------
if __name__ == "__main__":
    # Small shapes consistent with the module (scaled-down input / hiddens).
    BATCH = 8
    INPUT_SIZE = 64
    HIDDEN_SIZES = [32, 16, 16, 8]
    NUM_CLASSES = 10

    key = jax.random.PRNGKey(0)
    k_params, k_x, k_x2 = jax.random.split(key, 3)

    params = build_params(k_params, INPUT_SIZE, HIDDEN_SIZES, NUM_CLASSES)

    # bf16 matmul operands + approx-reciprocal sigmoid -> loosened tolerance.
    TOL = 3e-2

    # 1) Small batch -> single-launch, whole-arrays-in-VMEM path.
    x_small = jax.random.normal(k_x, (BATCH, INPUT_SIZE), jnp.float32)
    out_small = jax.block_until_ready(rcs_forward_fused(params, x_small, NUM_CLASSES))
    ref_small = rcs_forward_ref(params, x_small)
    assert out_small.shape == (BATCH, NUM_CLASSES)
    assert jnp.allclose(out_small, ref_small, atol=TOL, rtol=TOL), \
        "small-batch Pallas output != reference"

    # 2) Larger, non-tile-multiple batch -> padded, gridded ("parallel"),
    #    2-way sub-tile-interleaved path.
    x_big = jax.random.normal(k_x2, (384, INPUT_SIZE), jnp.float32)
    out_big = jax.block_until_ready(rcs_forward_fused(params, x_big, NUM_CLASSES))
    ref_big = rcs_forward_ref(params, x_big)
    assert out_big.shape == (384, NUM_CLASSES)
    assert jnp.allclose(out_big, ref_big, atol=TOL, rtol=TOL), \
        "gridded Pallas output != reference"

    # TODO(synk): Dropout treated as identity and BatchNorm folded with
    # eval-mode running stats (inference semantics); training-mode batch stats
    # / dropout masks are not implemented in-kernel.
    print("KERNEL_OK")
</pallas_src>

<mosaic_0001>
module attributes {stable_mosaic.version = 11 : i64} {
  func.func @_fused_forward_kernel(%arg0: memref<8x64xf32, #tpu.memory_space<vmem>>, %arg1: memref<13x128x128xbf16, #tpu.memory_space<vmem>>, %arg2: memref<13x1x128xf32, #tpu.memory_space<vmem>>, %arg3: memref<8x128xf32, #tpu.memory_space<vmem>>) attributes {dimension_semantics = [], scalar_prefetch = 0 : i64, scratch_operands = 0 : i64, tpu.core_type = #tpu.core_type<tc>} {
    %c0 = arith.constant 0 : index
    %c0_0 = arith.constant 0 : index
    %0 = vector.load %arg0[%c0, %c0_0] : memref<8x64xf32, #tpu.memory_space<vmem>>, vector<8x64xf32>
    %c0_1 = arith.constant 0 : index
    %c0_2 = arith.constant 0 : index
    %c0_3 = arith.constant 0 : index
    %1 = vector.load %arg1[%c0_1, %c0_2, %c0_3] : memref<13x128x128xbf16, #tpu.memory_space<vmem>>, vector<1x128x128xbf16>
    %2 = vector.shape_cast %1 : vector<1x128x128xbf16> to vector<128x128xbf16>
    %3 = vector.extract_strided_slice %2 {offsets = [0, 0], sizes = [64, 128], strides = [1, 1]} : vector<128x128xbf16> to vector<64x128xbf16>
    %4 = arith.truncf %0 : vector<8x64xf32> to vector<8x64xbf16>
    %cst = arith.constant dense<0.000000e+00> : vector<8x128xf32>
    %5 = tpu.matmul %4, %3, %cst {dimension_numbers = #tpu.dot_dimension_numbers<[1], [0], [0], [1], [0, 0, 1, 1], [], []>} : vector<8x64xbf16>, vector<64x128xbf16>, vector<8x128xf32> -> vector<8x128xf32>
    %c0_4 = arith.constant 0 : index
    %c0_5 = arith.constant 0 : index
    %c0_6 = arith.constant 0 : index
    %6 = vector.load %arg2[%c0_4, %c0_5, %c0_6] : memref<13x1x128xf32, #tpu.memory_space<vmem>>, vector<1x1x128xf32>
    %7 = vector.shape_cast %6 : vector<1x1x128xf32> to vector<1x128xf32>
    %8 = vector.broadcast %7 : vector<1x128xf32> to vector<8x128xf32>
    %9 = arith.addf %5, %8 : vector<8x128xf32>
    %cst_7 = arith.constant 0.000000e+00 : f32
    %10 = vector.broadcast %cst_7 : f32 to vector<8x128xf32>
    %11 = arith.maximumf %9, %10 : vector<8x128xf32>
    %12 = arith.truncf %11 : vector<8x128xf32> to vector<8x128xbf16>
    %c1 = arith.constant 1 : index
    %c0_8 = arith.constant 0 : index
    %c0_9 = arith.constant 0 : index
    %13 = vector.load %arg1[%c1, %c0_8, %c0_9] : memref<13x128x128xbf16, #tpu.memory_space<vmem>>, vector<1x128x128xbf16>
    %14 = vector.shape_cast %13 : vector<1x128x128xbf16> to vector<128x128xbf16>
    %cst_10 = arith.constant dense<0.000000e+00> : vector<8x128xf32>
    %15 = tpu.matmul %12, %14, %cst_10 {dimension_numbers = #tpu.dot_dimension_numbers<[1], [0], [0], [1], [0, 0, 1, 1], [], []>} : vector<8x128xbf16>, vector<128x128xbf16>, vector<8x128xf32> -> vector<8x128xf32>
    %c1_11 = arith.constant 1 : index
    %c0_12 = arith.constant 0 : index
    %c0_13 = arith.constant 0 : index
    %16 = vector.load %arg2[%c1_11, %c0_12, %c0_13] : memref<13x1x128xf32, #tpu.memory_space<vmem>>, vector<1x1x128xf32>
    %17 = vector.shape_cast %16 : vector<1x1x128xf32> to vector<1x128xf32>
    %18 = vector.broadcast %17 : vector<1x128xf32> to vector<8x128xf32>
    %19 = arith.addf %15, %18 : vector<8x128xf32>
    %cst_14 = arith.constant 0.000000e+00 : f32
    %20 = vector.broadcast %cst_14 : f32 to vector<8x128xf32>
    %21 = arith.maximumf %19, %20 : vector<8x128xf32>
    %22 = arith.truncf %21 : vector<8x128xf32> to vector<8x128xbf16>
    %c2 = arith.constant 2 : index
    %c0_15 = arith.constant 0 : index
    %c0_16 = arith.constant 0 : index
    %23 = vector.load %arg1[%c2, %c0_15, %c0_16] : memref<13x128x128xbf16, #tpu.memory_space<vmem>>, vector<1x128x128xbf16>
    %24 = vector.shape_cast %23 : vector<1x128x128xbf16> to vector<128x128xbf16>
    %cst_17 = arith.constant dense<0.000000e+00> : vector<8x128xf32>
    %25 = tpu.matmul %22, %24, %cst_17 {dimension_numbers = #tpu.dot_dimension_numbers<[1], [0], [0], [1], [0, 0, 1, 1], [], []>} : vector<8x128xbf16>, vector<128x128xbf16>, vector<8x128xf32> -> vector<8x128xf32>
    %c2_18 = arith.constant 2 : index
    %c0_19 = arith.constant 0 : index
    %c0_20 = arith.constant 0 : index
    %26 = vector.load %arg2[%c2_18, %c0_19, %c0_20] : memref<13x1x128xf32, #tpu.memory_space<vmem>>, vector<1x1x128xf32>
    %27 = vector.shape_cast %26 : vector<1x1x128xf32> to vector<1x128xf32>
    %28 = vector.broadcast %27 : vector<1x128xf32> to vector<8x128xf32>
    %29 = arith.addf %25, %28 : vector<8x128xf32>
    %30 = arith.truncf %29 : vector<8x128xf32> to vector<8x128xbf16>
    %c3 = arith.constant 3 : index
    %c0_21 = arith.constant 0 : index
    %c0_22 = arith.constant 0 : index
    %31 = vector.load %arg1[%c3, %c0_21, %c0_22] : memref<13x128x128xbf16, #tpu.memory_space<vmem>>, vector<1x128x128xbf16>
    %32 = vector.shape_cast %31 : vector<1x128x128xbf16> to vector<128x128xbf16>
    %cst_23 = arith.constant dense<0.000000e+00> : vector<8x128xf32>
    %33 = tpu.matmul %30, %32, %cst_23 {dimension_numbers = #tpu.dot_dimension_numbers<[1], [0], [0], [1], [0, 0, 1, 1], [], []>} : vector<8x128xbf16>, vector<128x128xbf16>, vector<8x128xf32> -> vector<8x128xf32>
    %c3_24 = arith.constant 3 : index
    %c0_25 = arith.constant 0 : index
    %c0_26 = arith.constant 0 : index
    %34 = vector.load %arg2[%c3_24, %c0_25, %c0_26] : memref<13x1x128xf32, #tpu.memory_space<vmem>>, vector<1x1x128xf32>
    %35 = vector.shape_cast %34 : vector<1x1x128xf32> to vector<1x128xf32>
    %36 = vector.broadcast %35 : vector<1x128xf32> to vector<8x128xf32>
    %37 = arith.addf %33, %36 : vector<8x128xf32>
    %cst_27 = arith.constant 0.000000e+00 : f32
    %38 = vector.broadcast %cst_27 : f32 to vector<8x128xf32>
    %39 = arith.maximumf %37, %38 : vector<8x128xf32>
    %40 = arith.truncf %39 : vector<8x128xf32> to vector<8x128xbf16>
    %c4 = arith.constant 4 : index
    %c0_28 = arith.constant 0 : index
    %c0_29 = arith.constant 0 : index
    %41 = vector.load %arg1[%c4, %c0_28, %c0_29] : memref<13x128x128xbf16, #tpu.memory_space<vmem>>, vector<1x128x128xbf16>
    %42 = vector.shape_cast %41 : vector<1x128x128xbf16> to vector<128x128xbf16>
    %cst_30 = arith.constant dense<0.000000e+00> : vector<8x128xf32>
    %43 = tpu.matmul %40, %42, %cst_30 {dimension_numbers = #tpu.dot_dimension_numbers<[1], [0], [0], [1], [0, 0, 1, 1], [], []>} : vector<8x128xbf16>, vector<128x128xbf16>, vector<8x128xf32> -> vector<8x128xf32>
    %c4_31 = arith.constant 4 : index
    %c0_32 = arith.constant 0 : index
    %c0_33 = arith.constant 0 : index
    %44 = vector.load %arg2[%c4_31, %c0_32, %c0_33] : memref<13x1x128xf32, #tpu.memory_space<vmem>>, vector<1x1x128xf32>
    %45 = vector.shape_cast %44 : vector<1x1x128xf32> to vector<1x128xf32>
    %46 = vector.broadcast %45 : vector<1x128xf32> to vector<8x128xf32>
    %47 = arith.addf %43, %46 : vector<8x128xf32>
    %cst_34 = arith.constant 0.000000e+00 : f32
    %48 = vector.broadcast %cst_34 : f32 to vector<8x128xf32>
    %49 = arith.subf %48, %47 : vector<8x128xf32>
    %50 = math.exp %49 : vector<8x128xf32>
    %cst_35 = arith.constant 1.000000e+00 : f32
    %51 = vector.broadcast %cst_35 : f32 to vector<8x128xf32>
    %52 = arith.addf %51, %50 : vector<8x128xf32>
    %53 = tpu.reciprocal %52 {approx = true} : vector<8x128xf32> -> vector<8x128xf32>
    %54 = arith.mulf %29, %53 : vector<8x128xf32>
    %55 = arith.addf %54, %11 : vector<8x128xf32>
    %cst_36 = arith.constant 0.000000e+00 : f32
    %56 = vector.broadcast %cst_36 : f32 to vector<8x128xf32>
    %57 = arith.maximumf %55, %56 : vector<8x128xf32>
    %58 = arith.truncf %57 : vector<8x128xf32> to vector<8x128xbf16>
    %c5 = arith.constant 5 : index
    %c0_37 = arith.constant 0 : index
    %c0_38 = arith.constant 0 : index
    %59 = vector.load %arg1[%c5, %c0_37, %c0_38] : memref<13x128x128xbf16, #tpu.memory_space<vmem>>, vector<1x128x128xbf16>
    %60 = vector.shape_cast %59 : vector<1x128x128xbf16> to vector<128x128xbf16>
    %cst_39 = arith.constant dense<0.000000e+00> : vector<8x128xf32>
    %61 = tpu.matmul %58, %60, %cst_39 {dimension_numbers = #tpu.dot_dimension_numbers<[1], [0], [0], [1], [0, 0, 1, 1], [], []>} : vector<8x128xbf16>, vector<128x128xbf16>, vector<8x128xf32> -> vector<8x128xf32>
    %c5_40 = arith.constant 5 : index
    %c0_41 = arith.constant 0 : index
    %c0_42 = arith.constant 0 : index
    %62 = vector.load %arg2[%c5_40, %c0_41, %c0_42] : memref<13x1x128xf32, #tpu.memory_space<vmem>>, vector<1x1x128xf32>
    %63 = vector.shape_cast %62 : vector<1x1x128xf32> to vector<1x128xf32>
    %64 = vector.broadcast %63 : vector<1x128xf32> to vector<8x128xf32>
    %65 = arith.addf %61, %64 : vector<8x128xf32>
    %cst_43 = arith.constant 0.000000e+00 : f32
    %66 = vector.broadcast %cst_43 : f32 to vector<8x128xf32>
    %67 = arith.maximumf %65, %66 : vector<8x128xf32>
    %68 = arith.truncf %67 : vector<8x128xf32> to vector<8x128xbf16>
    %c6 = arith.constant 6 : index
    %c0_44 = arith.constant 0 : index
    %c0_45 = arith.constant 0 : index
    %69 = vector.load %arg1[%c6, %c0_44, %c0_45] : memref<13x128x128xbf16, #tpu.memory_space<vmem>>, vector<1x128x128xbf16>
    %70 = vector.shape_cast %69 : vector<1x128x128xbf16> to vector<128x128xbf16>
    %cst_46 = arith.constant dense<0.000000e+00> : vector<8x128xf32>
    %71 = tpu.matmul %68, %70, %cst_46 {dimension_numbers = #tpu.dot_dimension_numbers<[1], [0], [0], [1], [0, 0, 1, 1], [], []>} : vector<8x128xbf16>, vector<128x128xbf16>, vector<8x128xf32> -> vector<8x128xf32>
    %c6_47 = arith.constant 6 : index
    %c0_48 = arith.constant 0 : index
    %c0_49 = arith.constant 0 : index
    %72 = vector.load %arg2[%c6_47, %c0_48, %c0_49] : memref<13x1x128xf32, #tpu.memory_space<vmem>>, vector<1x1x128xf32>
    %73 = vector.shape_cast %72 : vector<1x1x128xf32> to vector<1x128xf32>
    %74 = vector.broadcast %73 : vector<1x128xf32> to vector<8x128xf32>
    %75 = arith.addf %71, %74 : vector<8x128xf32>
    %76 = arith.truncf %75 : vector<8x128xf32> to vector<8x128xbf16>
    %c7 = arith.constant 7 : index
    %c0_50 = arith.constant 0 : index
    %c0_51 = arith.constant 0 : index
    %77 = vector.load %arg1[%c7, %c0_50, %c0_51] : memref<13x128x128xbf16, #tpu.memory_space<vmem>>, vector<1x128x128xbf16>
    %78 = vector.shape_cast %77 : vector<1x128x128xbf16> to vector<128x128xbf16>
    %cst_52 = arith.constant dense<0.000000e+00> : vector<8x128xf32>
    %79 = tpu.matmul %76, %78, %cst_52 {dimension_numbers = #tpu.dot_dimension_numbers<[1], [0], [0], [1], [0, 0, 1, 1], [], []>} : vector<8x128xbf16>, vector<128x128xbf16>, vector<8x128xf32> -> vector<8x128xf32>
    %c7_53 = arith.constant 7 : index
    %c0_54 = arith.constant 0 : index
    %c0_55 = arith.constant 0 : index
    %80 = vector.load %arg2[%c7_53, %c0_54, %c0_55] : memref<13x1x128xf32, #tpu.memory_space<vmem>>, vector<1x1x128xf32>
    %81 = vector.shape_cast %80 : vector<1x1x128xf32> to vector<1x128xf32>
    %82 = vector.broadcast %81 : vector<1x128xf32> to vector<8x128xf32>
    %83 = arith.addf %79, %82 : vector<8x128xf32>
    %cst_56 = arith.constant 0.000000e+00 : f32
    %84 = vector.broadcast %cst_56 : f32 to vector<8x128xf32>
    %85 = arith.maximumf %83, %84 : vector<8x128xf32>
    %86 = arith.truncf %85 : vector<8x128xf32> to vector<8x128xbf16>
    %c8 = arith.constant 8 : index
    %c0_57 = arith.constant 0 : index
    %c0_58 = arith.constant 0 : index
    %87 = vector.load %arg1[%c8, %c0_57, %c0_58] : memref<13x128x128xbf16, #tpu.memory_space<vmem>>, vector<1x128x128xbf16>
    %88 = vector.shape_cast %87 : vector<1x128x128xbf16> to vector<128x128xbf16>
    %cst_59 = arith.constant dense<0.000000e+00> : vector<8x128xf32>
    %89 = tpu.matmul %86, %88, %cst_59 {dimension_numbers = #tpu.dot_dimension_numbers<[1], [0], [0], [1], [0, 0, 1, 1], [], []>} : vector<8x128xbf16>, vector<128x128xbf16>, vector<8x128xf32> -> vector<8x128xf32>
    %c8_60 = arith.constant 8 : index
    %c0_61 = arith.constant 0 : index
    %c0_62 = arith.constant 0 : index
    %90 = vector.load %arg2[%c8_60, %c0_61, %c0_62] : memref<13x1x128xf32, #tpu.memory_space<vmem>>, vector<1x1x128xf32>
    %91 = vector.shape_cast %90 : vector<1x1x128xf32> to vector<1x128xf32>
    %92 = vector.broadcast %91 : vector<1x128xf32> to vector<8x128xf32>
    %93 = arith.addf %89, %92 : vector<8x128xf32>
    %cst_63 = arith.constant 0.000000e+00 : f32
    %94 = vector.broadcast %cst_63 : f32 to vector<8x128xf32>
    %95 = arith.subf %94, %93 : vector<8x128xf32>
    %96 = math.exp %95 : vector<8x128xf32>
    %cst_64 = arith.constant 1.000000e+00 : f32
    %97 = vector.broadcast %cst_64 : f32 to vector<8x128xf32>
    %98 = arith.addf %97, %96 : vector<8x128xf32>
    %99 = tpu.reciprocal %98 {approx = true} : vector<8x128xf32> -> vector<8x128xf32>
    %100 = arith.mulf %75, %99 : vector<8x128xf32>
    %101 = arith.addf %100, %57 : vector<8x128xf32>
    %cst_65 = arith.constant 0.000000e+00 : f32
    %102 = vector.broadcast %cst_65 : f32 to vector<8x128xf32>
    %103 = arith.maximumf %101, %102 : vector<8x128xf32>
    %104 = arith.truncf %103 : vector<8x128xf32> to vector<8x128xbf16>
    %c9 = arith.constant 9 : index
    %c0_66 = arith.constant 0 : index
    %c0_67 = arith.constant 0 : index
    %105 = vector.load %arg1[%c9, %c0_66, %c0_67] : memref<13x128x128xbf16, #tpu.memory_space<vmem>>, vector<1x128x128xbf16>
    %106 = vector.shape_cast %105 : vector<1x128x128xbf16> to vector<128x128xbf16>
    %cst_68 = arith.constant dense<0.000000e+00> : vector<8x128xf32>
    %107 = tpu.matmul %104, %106, %cst_68 {dimension_numbers = #tpu.dot_dimension_numbers<[1], [0], [0], [1], [0, 0, 1, 1], [], []>} : vector<8x128xbf16>, vector<128x128xbf16>, vector<8x128xf32> -> vector<8x128xf32>
    %c9_69 = arith.constant 9 : index
    %c0_70 = arith.constant 0 : index
    %c0_71 = arith.constant 0 : index
    %108 = vector.load %arg2[%c9_69, %c0_70, %c0_71] : memref<13x1x128xf32, #tpu.memory_space<vmem>>, vector<1x1x128xf32>
    %109 = vector.shape_cast %108 : vector<1x1x128xf32> to vector<1x128xf32>
    %110 = vector.broadcast %109 : vector<1x128xf32> to vector<8x128xf32>
    %111 = arith.addf %107, %110 : vector<8x128xf32>
    %cst_72 = arith.constant 0.000000e+00 : f32
    %112 = vector.broadcast %cst_72 : f32 to vector<8x128xf32>
    %113 = arith.maximumf %111, %112 : vector<8x128xf32>
    %114 = arith.truncf %113 : vector<8x128xf32> to vector<8x128xbf16>
    %c10 = arith.constant 10 : index
    %c0_73 = arith.constant 0 : index
    %c0_74 = arith.constant 0 : index
    %115 = vector.load %arg1[%c10, %c0_73, %c0_74] : memref<13x128x128xbf16, #tpu.memory_space<vmem>>, vector<1x128x128xbf16>
    %116 = vector.shape_cast %115 : vector<1x128x128xbf16> to vector<128x128xbf16>
    %cst_75 = arith.constant dense<0.000000e+00> : vector<8x128xf32>
    %117 = tpu.matmul %114, %116, %cst_75 {dimension_numbers = #tpu.dot_dimension_numbers<[1], [0], [0], [1], [0, 0, 1, 1], [], []>} : vector<8x128xbf16>, vector<128x128xbf16>, vector<8x128xf32> -> vector<8x128xf32>
    %c10_76 = arith.constant 10 : index
    %c0_77 = arith.constant 0 : index
    %c0_78 = arith.constant 0 : index
    %118 = vector.load %arg2[%c10_76, %c0_77, %c0_78] : memref<13x1x128xf32, #tpu.memory_space<vmem>>, vector<1x1x128xf32>
    %119 = vector.shape_cast %118 : vector<1x1x128xf32> to vector<1x128xf32>
    %120 = vector.broadcast %119 : vector<1x128xf32> to vector<8x128xf32>
    %121 = arith.addf %117, %120 : vector<8x128xf32>
    %cst_79 = arith.constant 0.000000e+00 : f32
    %122 = vector.broadcast %cst_79 : f32 to vector<8x128xf32>
    %123 = arith.maximumf %121, %122 : vector<8x128xf32>
    %124 = arith.truncf %123 : vector<8x128xf32> to vector<8x128xbf16>
    %c11 = arith.constant 11 : index
    %c0_80 = arith.constant 0 : index
    %c0_81 = arith.constant 0 : index
    %125 = vector.load %arg1[%c11, %c0_80, %c0_81] : memref<13x128x128xbf16, #tpu.memory_space<vmem>>, vector<1x128x128xbf16>
    %126 = vector.shape_cast %125 : vector<1x128x128xbf16> to vector<128x128xbf16>
    %cst_82 = arith.constant dense<0.000000e+00> : vector<8x128xf32>
    %127 = tpu.matmul %124, %126, %cst_82 {dimension_numbers = #tpu.dot_dimension_numbers<[1], [0], [0], [1], [0, 0, 1, 1], [], []>} : vector<8x128xbf16>, vector<128x128xbf16>, vector<8x128xf32> -> vector<8x128xf32>
    %c11_83 = arith.constant 11 : index
    %c0_84 = arith.constant 0 : index
    %c0_85 = arith.constant 0 : index
    %128 = vector.load %arg2[%c11_83, %c0_84, %c0_85] : memref<13x1x128xf32, #tpu.memory_space<vmem>>, vector<1x1x128xf32>
    %129 = vector.shape_cast %128 : vector<1x1x128xf32> to vector<1x128xf32>
    %130 = vector.broadcast %129 : vector<1x128xf32> to vector<8x128xf32>
    %131 = arith.addf %127, %130 : vector<8x128xf32>
    %cst_86 = arith.constant 0.000000e+00 : f32
    %132 = vector.broadcast %cst_86 : f32 to vector<8x128xf32>
    %133 = arith.maximumf %131, %132 : vector<8x128xf32>
    %134 = arith.truncf %133 : vector<8x128xf32> to vector<8x128xbf16>
    %c12 = arith.constant 12 : index
    %c0_87 = arith.constant 0 : index
    %c0_88 = arith.constant 0 : index
    %135 = vector.load %arg1[%c12, %c0_87, %c0_88] : memref<13x128x128xbf16, #tpu.memory_space<vmem>>, vector<1x128x128xbf16>
    %136 = vector.shape_cast %135 : vector<1x128x128xbf16> to vector<128x128xbf16>
    %cst_89 = arith.constant dense<0.000000e+00> : vector<8x128xf32>
    %137 = tpu.matmul %134, %136, %cst_89 {dimension_numbers = #tpu.dot_dimension_numbers<[1], [0], [0], [1], [0, 0, 1, 1], [], []>} : vector<8x128xbf16>, vector<128x128xbf16>, vector<8x128xf32> -> vector<8x128xf32>
    %c12_90 = arith.constant 12 : index
    %c0_91 = arith.constant 0 : index
    %c0_92 = arith.constant 0 : index
    %138 = vector.load %arg2[%c12_90, %c0_91, %c0_92] : memref<13x1x128xf32, #tpu.memory_space<vmem>>, vector<1x1x128xf32>
    %139 = vector.shape_cast %138 : vector<1x1x128xf32> to vector<1x128xf32>
    %140 = vector.broadcast %139 : vector<1x128xf32> to vector<8x128xf32>
    %141 = arith.addf %137, %140 : vector<8x128xf32>
    %c0_93 = arith.constant 0 : index
    %c0_94 = arith.constant 0 : index
    %142 = vector.load %arg3[%c0_93, %c0_94] : memref<8x128xf32, #tpu.memory_space<vmem>>, vector<8x128xf32>
    tpu.vector_store %arg3[%c0_93, %c0_94], %141 {strides = array<i32>} : memref<8x128xf32, #tpu.memory_space<vmem>>, vector<8x128xf32>,
    return
  }
}

</mosaic_0001>

<llo_original>
// kernel: tpu_custom_call.1
$region0: #{tpu_custom_call.1}
  #allocation0 [shape = 'u32[]', space=smem, size = 0x4, offset = 0x4, fixed_abs, tag = 'smem constant byte address 0x4 - core index']
  #allocation1 [shape = 'u32[144,128]{1,0:T(1,128)}', space=vmem, size = 0x12000, scoped, tag = 'internal scratch']
  %s0 = inlined_call_operand.hbm [shape: f32[8,64], index: 0, kind: input, shape index: {}]
  %s1 = inlined_call_operand.hbm [shape: bf16[13,128,128], index: 1, kind: input, shape index: {}]
  %s2 = inlined_call_operand.hbm [shape: f32[13,1,128], index: 2, kind: input, shape index: {}]
  %s3 = inlined_call_operand.hbm [shape: f32[8,128], index: 3, kind: output, shape index: {}]
  %s4 = sld [smem:[#allocation0]]
  $region34: #{tpu_custom_call.1} parent=0
    _
  %s6 = ssub.s32 1, %s4
  %s7 = scalar_select 0, %s6, %s4
  $region1: #{tpu_custom_call.1} parent=0
    #allocation2 [shape = 'u8[4096]{0}', space=vmem, size = 0x1000, scoped, tag = 'input window, operand 0, single buffered']
    #allocation3 [shape = 's32[1]{0}', space=sflag, size = 0x4, scoped, tag = 'scoped memory for tpu_custom_call.1']
    #allocation4 [shape = 's32[1]{0}', space=sflag, size = 0x4, scoped, tag = 'scoped memory for tpu_custom_call.1']
    #allocation5 [shape = 'u8[425984]{0}', space=vmem, size = 0x68000, scoped, tag = 'input window, operand 1, single buffered']
    #allocation6 [shape = 's32[1]{0}', space=sflag, size = 0x4, scoped, tag = 'scoped memory for tpu_custom_call.1']
    #allocation7 [shape = 'u8[6656]{0}', space=vmem, size = 0x1c00, scoped, tag = 'input window, operand 2, single buffered']
    #allocation8 [shape = 'u8[4096]{0}', space=vmem, size = 0x1000, scoped, tag = 'output window, operand 0, single buffered']
    %8 = vsyncpa [#allocation3], 0
    %9 = vsyncpa [#allocation6], 0
    %10 = vsyncpa [#allocation4], 0
    // Predicated region
    $region2: #{tpu_custom_call.1} parent=1 // pred_check
      _
    $region3: #{tpu_custom_call.1} parent=1 // pred_check_branch
      %12 = sbr.rel (0) target = $region5
    $region4: #{tpu_custom_call.1} parent=1 // pred_region
      %s14 = ssub.s32 128, 128
      %15 = vsyncadd [#allocation3], %s14
      %s17 = sshll.u32 [#allocation2], 4
      %s18 = int_to_ptr.vmem [resolvable:$true] %s17
      %20 = dma.hbm_to_vmem [thread:$0]  %s0, 128, %s18, [#allocation3]
    $region5: #{tpu_custom_call.1} parent=1 // pred_fallthru
      _
    // Predicated region
    $region6: #{tpu_custom_call.1} parent=1 // pred_check
      _
    $region7: #{tpu_custom_call.1} parent=1 // pred_check_branch
      %22 = sbr.rel (0) target = $region9
    $region8: #{tpu_custom_call.1} parent=1 // pred_region
      %s24 = ssub.s32 13312, 13312
      %25 = vsyncadd [#allocation6], %s24
      %s26 = sshll.u32 [#allocation5], 4
      %s27 = int_to_ptr.vmem [resolvable:$true] %s26
      %32 = dma.hbm_to_vmem [thread:$0]  %s1, 13312, %s27, [#allocation6], 64, 64, 4
    $region9: #{tpu_custom_call.1} parent=1 // pred_fallthru
      _
    // Predicated region
    $region10: #{tpu_custom_call.1} parent=1 // pred_check
      _
    $region11: #{tpu_custom_call.1} parent=1 // pred_check_branch
      %34 = sbr.rel (0) target = $region13
    $region12: #{tpu_custom_call.1} parent=1 // pred_region
      %s36 = ssub.s32 208, 208
      %37 = vsyncadd [#allocation6], %s36
      %s38 = sshll.u32 [#allocation7], 4
      %s39 = int_to_ptr.vmem [resolvable:$true] %s38
      %44 = dma.hbm_to_vmem [thread:$0]  %s2, 208, %s39, [#allocation6], 16, 16, 1
    $region13: #{tpu_custom_call.1} parent=1 // pred_fallthru
      _
    // Predicated region
    $region14: #{tpu_custom_call.1} parent=1 // pred_check
      _
    $region15: #{tpu_custom_call.1} parent=1 // pred_check_branch
      %46 = sbr.rel (0) target = $region17
    $region16: #{tpu_custom_call.1} parent=1 // pred_region
      %47 = dma.done [#allocation3], 128
    $region17: #{tpu_custom_call.1} parent=1 // pred_fallthru
      _
    // Predicated region
    $region18: #{tpu_custom_call.1} parent=1 // pred_check
      _
    $region19: #{tpu_custom_call.1} parent=1 // pred_check_branch
      %49 = sbr.rel (0) target = $region21
    $region20: #{tpu_custom_call.1} parent=1 // pred_region
      %50 = dma.done [#allocation6], 13312
    $region21: #{tpu_custom_call.1} parent=1 // pred_fallthru
      _
    // Predicated region
    $region22: #{tpu_custom_call.1} parent=1 // pred_check
      _
    $region23: #{tpu_custom_call.1} parent=1 // pred_check_branch
      %52 = sbr.rel (0) target = $region25
    $region24: #{tpu_custom_call.1} parent=1 // pred_region
      %53 = dma.done [#allocation6], 208
    $region25: #{tpu_custom_call.1} parent=1 // pred_fallthru
      _
    %v55 = vld [vmem:[#allocation2] sm:$0xff]
    %v56 = vld [vmem:[#allocation5] sm:$0xf]
    %v57 = vld [vmem:[#allocation5 + $0x4] sm:$0xf]
    %v58 = vld [vmem:[#allocation5 + $0x8] sm:$0xf]
    %v59 = vld [vmem:[#allocation5 + $0xc] sm:$0xf]
    %v60 = vld [vmem:[#allocation5 + $0x10] sm:$0xf]
    %v61 = vld [vmem:[#allocation5 + $0x14] sm:$0xf]
    %v62 = vld [vmem:[#allocation5 + $0x18] sm:$0xf]
    %v63 = vld [vmem:[#allocation5 + $0x1c] sm:$0xf]
    %v64 = vpack.c.bf16 %v55, %v55
    %v65 = vld [vmem:[#allocation7] sm:$0x1]
    %v67 = vlaneseq
    %v68 = vshrl.u32 %v67, 7
    %v69 = vsub.s32 0, %v68
    %v70 = vrot.slane %v65, %v69
    %v80 = vunpack.c.l.b16 %v56
    %v81 = vunpack.c.l.b16 %v57
    %v82 = vunpack.c.l.b16 %v58
    %v83 = vunpack.c.l.b16 %v59
    %v84 = vunpack.c.l.b16 %v60
    %v85 = vunpack.c.l.b16 %v61
    %v86 = vunpack.c.l.b16 %v62
    %v87 = vunpack.c.l.b16 %v63
    %v88 = vpack.c.b16 %v81, %v80
    %v89 = vpack.c.b16 %v83, %v82
    %v90 = vpack.c.b16 %v85, %v84
    %v91 = vpack.c.b16 %v87, %v86
    %vm96 = vcmask 523264
    %v98 = vsel %vm96, %v64, 0
    %100 = vmatprep.subr.bf16.mxu0 0
    %101 = vmatpush1.bf16.msra.mxu0 %v88
    %102 = vmatprep.subr.bf16.mxu0 0
    %103 = vmatpush1.bf16.msra.mxu0 %v89
    %104 = vmatprep.subr.bf16.mxu0 0
    %105 = vmatpush1.bf16.msra.mxu0 %v90
    %106 = vmatprep.subr.bf16.mxu0 0
    %107 = vmatpush1.bf16.msra.mxu0 %v91
    %108 = vmatprep.subr.bf16.mxu0 0
    %109 = vmatpush1.bf16.msra.mxu0 0
    %110 = vmatprep.subr.bf16.mxu0 0
    %111 = vmatpush1.bf16.msra.mxu0 0
    %112 = vmatprep.subr.bf16.mxu0 0
    %113 = vmatpush1.bf16.msra.mxu0 0
    %114 = vmatprep.subr.bf16.mxu0 0
    %115 = vmatpush1.bf16.msra.mxu0 0
    %116 = vmatprep.subr.bf16.mxu0 0
    %117 = vmatpush1.bf16.msra.mxu0 0
    %118 = vmatprep.subr.bf16.mxu0 0
    %119 = vmatpush1.bf16.msra.mxu0 0
    %120 = vmatprep.subr.bf16.mxu0 0
    %121 = vmatpush1.bf16.msra.mxu0 0
    %122 = vmatprep.subr.bf16.mxu0 0
    %123 = vmatpush1.bf16.msra.mxu0 0
    %124 = vmatprep.subr.bf16.mxu0 0
    %125 = vmatpush1.bf16.msra.mxu0 0
    %126 = vmatprep.subr.bf16.mxu0 0
    %127 = vmatpush1.bf16.msra.mxu0 0
    %128 = vmatprep.subr.bf16.mxu0 0
    %129 = vmatpush1.bf16.msra.mxu0 0
    %130 = vmatprep.subr.bf16.mxu0 0
    %131 = vmatpush1.bf16.msra.mxu0 0
    %132 = vmatprep.mubr.bf16.mxu0 0
    %133 = vmatmul.mubr.bf16.gmra.mrb[0].mxu0 %v98
    %v134 = vpop.f32.mrb[0].mxu0
    %v135 = vadd.f32 %v70, %v134
    %v136 = vpop.f32.mrb[0].mxu0
    %v137 = vpop.f32.mrb[0].mxu0
    %v138 = vpop.f32.mrb[0].mxu0
    %139 = vdwg.mxu0
    %v140 = vmax.f32 %v135, 0.0
    %v141 = vpack.c.bf16 %v140, %v140
    %s142 = scalar_lea.vmem [#allocation5], 64
    %v143 = vld [vmem:[%s142] sm:$0xf]
    %v144 = vld [vmem:[%s142 + $0x4] sm:$0xf]
    %v145 = vld [vmem:[%s142 + $0x8] sm:$0xf]
    %v146 = vld [vmem:[%s142 + $0xc] sm:$0xf]
    %v147 = vld [vmem:[%s142 + $0x10] sm:$0xf]
    %v148 = vld [vmem:[%s142 + $0x14] sm:$0xf]
    %v149 = vld [vmem:[%s142 + $0x18] sm:$0xf]
    %v150 = vld [vmem:[%s142 + $0x1c] sm:$0xf]
    %v151 = vld [vmem:[%s142 + $0x20] sm:$0xf]
    %v152 = vld [vmem:[%s142 + $0x24] sm:$0xf]
    %v153 = vld [vmem:[%s142 + $0x28] sm:$0xf]
    %v154 = vld [vmem:[%s142 + $0x2c] sm:$0xf]
    %v155 = vld [vmem:[%s142 + $0x30] sm:$0xf]
    %v156 = vld [vmem:[%s142 + $0x34] sm:$0xf]
    %v157 = vld [vmem:[%s142 + $0x38] sm:$0xf]
    %v158 = vld [vmem:[%s142 + $0x3c] sm:$0xf]
    %s159 = scalar_lea.vmem [#allocation7], 1
    %v160 = vld [vmem:[%s159] sm:$0x1]
    %v162 = vlaneseq
    %v163 = vshrl.u32 %v162, 7
    %v164 = vsub.s32 0, %v163
    %v165 = vrot.slane %v160, %v164
    %v183 = vunpack.c.l.b16 %v143
    %v184 = vunpack.c.l.b16 %v144
    %v185 = vunpack.c.l.b16 %v145
    %v186 = vunpack.c.l.b16 %v146
    %v187 = vunpack.c.l.b16 %v147
    %v188 = vunpack.c.l.b16 %v148
    %v189 = vunpack.c.l.b16 %v149
    %v190 = vunpack.c.l.b16 %v150
    %v191 = vunpack.c.l.b16 %v151
    %v192 = vunpack.c.l.b16 %v152
    %v193 = vunpack.c.l.b16 %v153
    %v194 = vunpack.c.l.b16 %v154
    %v195 = vunpack.c.l.b16 %v155
    %v196 = vunpack.c.l.b16 %v156
    %v197 = vunpack.c.l.b16 %v157
    %v198 = vunpack.c.l.b16 %v158
    %v199 = vpack.c.b16 %v184, %v183
    %v200 = vpack.c.b16 %v186, %v185
    %v201 = vpack.c.b16 %v188, %v187
    %v202 = vpack.c.b16 %v190, %v189
    %v203 = vpack.c.b16 %v192, %v191
    %v204 = vpack.c.b16 %v194, %v193
    %v205 = vpack.c.b16 %v196, %v195
    %v206 = vpack.c.b16 %v198, %v197
    %215 = vmatprep.subr.bf16.mxu0 0
    %216 = vmatpush1.bf16.msra.mxu0 %v199
    %217 = vmatprep.subr.bf16.mxu0 0
    %218 = vmatpush1.bf16.msra.mxu0 %v200
    %219 = vmatprep.subr.bf16.mxu0 0
    %220 = vmatpush1.bf16.msra.mxu0 %v201
    %221 = vmatprep.subr.bf16.mxu0 0
    %222 = vmatpush1.bf16.msra.mxu0 %v202
    %223 = vmatprep.subr.bf16.mxu0 0
    %224 = vmatpush1.bf16.msra.mxu0 %v203
    %225 = vmatprep.subr.bf16.mxu0 0
    %226 = vmatpush1.bf16.msra.mxu0 %v204
    %227 = vmatprep.subr.bf16.mxu0 0
    %228 = vmatpush1.bf16.msra.mxu0 %v205
    %229 = vmatprep.subr.bf16.mxu0 0
    %230 = vmatpush1.bf16.msra.mxu0 %v206
    %231 = vmatprep.subr.bf16.mxu0 0
    %232 = vmatpush1.bf16.msra.mxu0 0
    %233 = vmatprep.subr.bf16.mxu0 0
    %234 = vmatpush1.bf16.msra.mxu0 0
    %235 = vmatprep.subr.bf16.mxu0 0
    %236 = vmatpush1.bf16.msra.mxu0 0
    %237 = vmatprep.subr.bf16.mxu0 0
    %238 = vmatpush1.bf16.msra.mxu0 0
    %239 = vmatprep.subr.bf16.mxu0 0
    %240 = vmatpush1.bf16.msra.mxu0 0
    %241 = vmatprep.subr.bf16.mxu0 0
    %242 = vmatpush1.bf16.msra.mxu0 0
    %243 = vmatprep.subr.bf16.mxu0 0
    %244 = vmatpush1.bf16.msra.mxu0 0
    %245 = vmatprep.subr.bf16.mxu0 0
    %246 = vmatpush1.bf16.msra.mxu0 0
    %247 = vmatprep.mubr.bf16.mxu0 0
    %248 = vmatmul.mubr.bf16.gmra.mrb[0].mxu0 %v141
    %v249 = vpop.f32.mrb[0].mxu0
    %v250 = vadd.f32 %v165, %v249
    %v251 = vpop.f32.mrb[0].mxu0
    %v252 = vpop.f32.mrb[0].mxu0
    %v253 = vpop.f32.mrb[0].mxu0
    %254 = vdwg.mxu0
    %v255 = vmax.f32 %v250, 0.0
    %v256 = vpack.c.bf16 %v255, %v255
    %s257 = scalar_lea.vmem [#allocation5], 128
    %v258 = vld [vmem:[%s257] sm:$0xf]
    %v259 = vld [vmem:[%s257 + $0x4] sm:$0xf]
    %v260 = vld [vmem:[%s257 + $0x8] sm:$0xf]
    %v261 = vld [vmem:[%s257 + $0xc] sm:$0xf]
    %v262 = vld [vmem:[%s257 + $0x10] sm:$0xf]
    %v263 = vld [vmem:[%s257 + $0x14] sm:$0xf]
    %v264 = vld [vmem:[%s257 + $0x18] sm:$0xf]
    %v265 = vld [vmem:[%s257 + $0x1c] sm:$0xf]
    %v266 = vld [vmem:[%s257 + $0x20] sm:$0xf]
    %v267 = vld [vmem:[%s257 + $0x24] sm:$0xf]
    %v268 = vld [vmem:[%s257 + $0x28] sm:$0xf]
    %v269 = vld [vmem:[%s257 + $0x2c] sm:$0xf]
    %v270 = vld [vmem:[%s257 + $0x30] sm:$0xf]
    %v271 = vld [vmem:[%s257 + $0x34] sm:$0xf]
    %v272 = vld [vmem:[%s257 + $0x38] sm:$0xf]
    %v273 = vld [vmem:[%s257 + $0x3c] sm:$0xf]
    %s274 = scalar_lea.vmem [#allocation7], 2
    %v275 = vld [vmem:[%s274] sm:$0x1]
    %v277 = vlaneseq
    %v278 = vshrl.u32 %v277, 7
    %v279 = vsub.s32 0, %v278
    %v280 = vrot.slane %v275, %v279
    %v298 = vunpack.c.l.b16 %v258
    %v299 = vunpack.c.l.b16 %v259
    %v300 = vunpack.c.l.b16 %v260
    %v301 = vunpack.c.l.b16 %v261
    %v302 = vunpack.c.l.b16 %v262
    %v303 = vunpack.c.l.b16 %v263
    %v304 = vunpack.c.l.b16 %v264
    %v305 = vunpack.c.l.b16 %v265
    %v306 = vunpack.c.l.b16 %v266
    %v307 = vunpack.c.l.b16 %v267
    %v308 = vunpack.c.l.b16 %v268
    %v309 = vunpack.c.l.b16 %v269
    %v310 = vunpack.c.l.b16 %v270
    %v311 = vunpack.c.l.b16 %v271
    %v312 = vunpack.c.l.b16 %v272
    %v313 = vunpack.c.l.b16 %v273
    %v314 = vpack.c.b16 %v299, %v298
    %v315 = vpack.c.b16 %v301, %v300
    %v316 = vpack.c.b16 %v303, %v302
    %v317 = vpack.c.b16 %v305, %v304
    %v318 = vpack.c.b16 %v307, %v306
    %v319 = vpack.c.b16 %v309, %v308
    %v320 = vpack.c.b16 %v311, %v310
    %v321 = vpack.c.b16 %v313, %v312
    %330 = vmatprep.subr.bf16.mxu0 0
    %331 = vmatpush1.bf16.msra.mxu0 %v314
    %332 = vmatprep.subr.bf16.mxu0 0
    %333 = vmatpush1.bf16.msra.mxu0 %v315
    %334 = vmatprep.subr.bf16.mxu0 0
    %335 = vmatpush1.bf16.msra.mxu0 %v316
    %336 = vmatprep.subr.bf16.mxu0 0
    %337 = vmatpush1.bf16.msra.mxu0 %v317
    %338 = vmatprep.subr.bf16.mxu0 0
    %339 = vmatpush1.bf16.msra.mxu0 %v318
    %340 = vmatprep.subr.bf16.mxu0 0
    %341 = vmatpush1.bf16.msra.mxu0 %v319
    %342 = vmatprep.subr.bf16.mxu0 0
    %343 = vmatpush1.bf16.msra.mxu0 %v320
    %344 = vmatprep.subr.bf16.mxu0 0
    %345 = vmatpush1.bf16.msra.mxu0 %v321
    %346 = vmatprep.subr.bf16.mxu0 0
    %347 = vmatpush1.bf16.msra.mxu0 0
    %348 = vmatprep.subr.bf16.mxu0 0
    %349 = vmatpush1.bf16.msra.mxu0 0
    %350 = vmatprep.subr.bf16.mxu0 0
    %351 = vmatpush1.bf16.msra.mxu0 0
    %352 = vmatprep.subr.bf16.mxu0 0
    %353 = vmatpush1.bf16.msra.mxu0 0
    %354 = vmatprep.subr.bf16.mxu0 0
    %355 = vmatpush1.bf16.msra.mxu0 0
    %356 = vmatprep.subr.bf16.mxu0 0
    %357 = vmatpush1.bf16.msra.mxu0 0
    %358 = vmatprep.subr.bf16.mxu0 0
    %359 = vmatpush1.bf16.msra.mxu0 0
    %360 = vmatprep.subr.bf16.mxu0 0
    %361 = vmatpush1.bf16.msra.mxu0 0
    %362 = vmatprep.mubr.bf16.mxu0 0
    %363 = vmatmul.mubr.bf16.gmra.mrb[0].mxu0 %v256
    %v364 = vpop.f32.mrb[0].mxu0
    %v365 = vadd.f32 %v280, %v364
    %v366 = vpop.f32.mrb[0].mxu0
    %v367 = vpop.f32.mrb[0].mxu0
    %v368 = vpop.f32.mrb[0].mxu0
    %369 = vdwg.mxu0
    %v370 = vpack.c.bf16 %v365, %v365
    %s371 = scalar_lea.vmem [#allocation5], 192
    %v372 = vld [vmem:[%s371] sm:$0xf]
    %v373 = vld [vmem:[%s371 + $0x4] sm:$0xf]
    %v374 = vld [vmem:[%s371 + $0x8] sm:$0xf]
    %v375 = vld [vmem:[%s371 + $0xc] sm:$0xf]
    %v376 = vld [vmem:[%s371 + $0x10] sm:$0xf]
    %v377 = vld [vmem:[%s371 + $0x14] sm:$0xf]
    %v378 = vld [vmem:[%s371 + $0x18] sm:$0xf]
    %v379 = vld [vmem:[%s371 + $0x1c] sm:$0xf]
    %v380 = vld [vmem:[%s371 + $0x20] sm:$0xf]
    %v381 = vld [vmem:[%s371 + $0x24] sm:$0xf]
    %v382 = vld [vmem:[%s371 + $0x28] sm:$0xf]
    %v383 = vld [vmem:[%s371 + $0x2c] sm:$0xf]
    %v384 = vld [vmem:[%s371 + $0x30] sm:$0xf]
    %v385 = vld [vmem:[%s371 + $0x34] sm:$0xf]
    %v386 = vld [vmem:[%s371 + $0x38] sm:$0xf]
    %v387 = vld [vmem:[%s371 + $0x3c] sm:$0xf]
    %s388 = scalar_lea.vmem [#allocation7], 3
    %v389 = vld [vmem:[%s388] sm:$0x1]
    %v391 = vlaneseq
    %v392 = vshrl.u32 %v391, 7
    %v393 = vsub.s32 0, %v392
    %v394 = vrot.slane %v389, %v393
    %v412 = vunpack.c.l.b16 %v372
    %v413 = vunpack.c.l.b16 %v373
    %v414 = vunpack.c.l.b16 %v374
    %v415 = vunpack.c.l.b16 %v375
    %v416 = vunpack.c.l.b16 %v376
    %v417 = vunpack.c.l.b16 %v377
    %v418 = vunpack.c.l.b16 %v378
    %v419 = vunpack.c.l.b16 %v379
    %v420 = vunpack.c.l.b16 %v380
    %v421 = vunpack.c.l.b16 %v381
    %v422 = vunpack.c.l.b16 %v382
    %v423 = vunpack.c.l.b16 %v383
    %v424 = vunpack.c.l.b16 %v384
    %v425 = vunpack.c.l.b16 %v385
    %v426 = vunpack.c.l.b16 %v386
    %v427 = vunpack.c.l.b16 %v387
    %v428 = vpack.c.b16 %v413, %v412
    %v429 = vpack.c.b16 %v415, %v414
    %v430 = vpack.c.b16 %v417, %v416
    %v431 = vpack.c.b16 %v419, %v418
    %v432 = vpack.c.b16 %v421, %v420
    %v433 = vpack.c.b16 %v423, %v422
    %v434 = vpack.c.b16 %v425, %v424
    %v435 = vpack.c.b16 %v427, %v426
    %444 = vmatprep.subr.bf16.mxu0 0
    %445 = vmatpush1.bf16.msra.mxu0 %v428
    %446 = vmatprep.subr.bf16.mxu0 0
    %447 = vmatpush1.bf16.msra.mxu0 %v429
    %448 = vmatprep.subr.bf16.mxu0 0
    %449 = vmatpush1.bf16.msra.mxu0 %v430
    %450 = vmatprep.subr.bf16.mxu0 0
    %451 = vmatpush1.bf16.msra.mxu0 %v431
    %452 = vmatprep.subr.bf16.mxu0 0
    %453 = vmatpush1.bf16.msra.mxu0 %v432
    %454 = vmatprep.subr.bf16.mxu0 0
    %455 = vmatpush1.bf16.msra.mxu0 %v433
    %456 = vmatprep.subr.bf16.mxu0 0
    %457 = vmatpush1.bf16.msra.mxu0 %v434
    %458 = vmatprep.subr.bf16.mxu0 0
    %459 = vmatpush1.bf16.msra.mxu0 %v435
    %460 = vmatprep.subr.bf16.mxu0 0
    %461 = vmatpush1.bf16.msra.mxu0 0
    %462 = vmatprep.subr.bf16.mxu0 0
    %463 = vmatpush1.bf16.msra.mxu0 0
    %464 = vmatprep.subr.bf16.mxu0 0
    %465 = vmatpush1.bf16.msra.mxu0 0
    %466 = vmatprep.subr.bf16.mxu0 0
    %467 = vmatpush1.bf16.msra.mxu0 0
    %468 = vmatprep.subr.bf16.mxu0 0
    %469 = vmatpush1.bf16.msra.mxu0 0
    %470 = vmatprep.subr.bf16.mxu0 0
    %471 = vmatpush1.bf16.msra.mxu0 0
    %472 = vmatprep.subr.bf16.mxu0 0
    %473 = vmatpush1.bf16.msra.mxu0 0
    %474 = vmatprep.subr.bf16.mxu0 0
    %475 = vmatpush1.bf16.msra.mxu0 0
    %476 = vmatprep.mubr.bf16.mxu0 0
    %477 = vmatmul.mubr.bf16.gmra.mrb[0].mxu0 %v370
    %v478 = vpop.f32.mrb[0].mxu0
    %v479 = vadd.f32 %v394, %v478
    %v480 = vpop.f32.mrb[0].mxu0
    %v481 = vpop.f32.mrb[0].mxu0
    %v482 = vpop.f32.mrb[0].mxu0
    %483 = vdwg.mxu0
    %v484 = vmax.f32 %v479, 0.0
    %v485 = vpack.c.bf16 %v484, %v484
    %s486 = scalar_lea.vmem [#allocation5], 256
    %v487 = vld [vmem:[%s486] sm:$0xf]
    %v488 = vld [vmem:[%s486 + $0x4] sm:$0xf]
    %v489 = vld [vmem:[%s486 + $0x8] sm:$0xf]
    %v490 = vld [vmem:[%s486 + $0xc] sm:$0xf]
    %v491 = vld [vmem:[%s486 + $0x10] sm:$0xf]
    %v492 = vld [vmem:[%s486 + $0x14] sm:$0xf]
    %v493 = vld [vmem:[%s486 + $0x18] sm:$0xf]
    %v494 = vld [vmem:[%s486 + $0x1c] sm:$0xf]
    %v495 = vld [vmem:[%s486 + $0x20] sm:$0xf]
    %v496 = vld [vmem:[%s486 + $0x24] sm:$0xf]
    %v497 = vld [vmem:[%s486 + $0x28] sm:$0xf]
    %v498 = vld [vmem:[%s486 + $0x2c] sm:$0xf]
    %v499 = vld [vmem:[%s486 + $0x30] sm:$0xf]
    %v500 = vld [vmem:[%s486 + $0x34] sm:$0xf]
    %v501 = vld [vmem:[%s486 + $0x38] sm:$0xf]
    %v502 = vld [vmem:[%s486 + $0x3c] sm:$0xf]
    %s503 = scalar_lea.vmem [#allocation7], 4
    %v504 = vld [vmem:[%s503] sm:$0x1]
    %v506 = vlaneseq
    %v507 = vshrl.u32 %v506, 7
    %v508 = vsub.s32 0, %v507
    %v509 = vrot.slane %v504, %v508
    %v527 = vunpack.c.l.b16 %v487
    %v528 = vunpack.c.l.b16 %v488
    %v529 = vunpack.c.l.b16 %v489
    %v530 = vunpack.c.l.b16 %v490
    %v531 = vunpack.c.l.b16 %v491
    %v532 = vunpack.c.l.b16 %v492
    %v533 = vunpack.c.l.b16 %v493
    %v534 = vunpack.c.l.b16 %v494
    %v535 = vunpack.c.l.b16 %v495
    %v536 = vunpack.c.l.b16 %v496
    %v537 = vunpack.c.l.b16 %v497
    %v538 = vunpack.c.l.b16 %v498
    %v539 = vunpack.c.l.b16 %v499
    %v540 = vunpack.c.l.b16 %v500
    %v541 = vunpack.c.l.b16 %v501
    %v542 = vunpack.c.l.b16 %v502
    %v543 = vpack.c.b16 %v528, %v527
    %v544 = vpack.c.b16 %v530, %v529
    %v545 = vpack.c.b16 %v532, %v531
    %v546 = vpack.c.b16 %v534, %v533
    %v547 = vpack.c.b16 %v536, %v535
    %v548 = vpack.c.b16 %v538, %v537
    %v549 = vpack.c.b16 %v540, %v539
    %v550 = vpack.c.b16 %v542, %v541
    %559 = vmatprep.subr.bf16.mxu0 0
    %560 = vmatpush1.bf16.msra.mxu0 %v543
    %561 = vmatprep.subr.bf16.mxu0 0
    %562 = vmatpush1.bf16.msra.mxu0 %v544
    %563 = vmatprep.subr.bf16.mxu0 0
    %564 = vmatpush1.bf16.msra.mxu0 %v545
    %565 = vmatprep.subr.bf16.mxu0 0
    %566 = vmatpush1.bf16.msra.mxu0 %v546
    %567 = vmatprep.subr.bf16.mxu0 0
    %568 = vmatpush1.bf16.msra.mxu0 %v547
    %569 = vmatprep.subr.bf16.mxu0 0
    %570 = vmatpush1.bf16.msra.mxu0 %v548
    %571 = vmatprep.subr.bf16.mxu0 0
    %572 = vmatpush1.bf16.msra.mxu0 %v549
    %573 = vmatprep.subr.bf16.mxu0 0
    %574 = vmatpush1.bf16.msra.mxu0 %v550
    %575 = vmatprep.subr.bf16.mxu0 0
    %576 = vmatpush1.bf16.msra.mxu0 0
    %577 = vmatprep.subr.bf16.mxu0 0
    %578 = vmatpush1.bf16.msra.mxu0 0
    %579 = vmatprep.subr.bf16.mxu0 0
    %580 = vmatpush1.bf16.msra.mxu0 0
    %581 = vmatprep.subr.bf16.mxu0 0
    %582 = vmatpush1.bf16.msra.mxu0 0
    %583 = vmatprep.subr.bf16.mxu0 0
    %584 = vmatpush1.bf16.msra.mxu0 0
    %585 = vmatprep.subr.bf16.mxu0 0
    %586 = vmatpush1.bf16.msra.mxu0 0
    %587 = vmatprep.subr.bf16.mxu0 0
    %588 = vmatpush1.bf16.msra.mxu0 0
    %589 = vmatprep.subr.bf16.mxu0 0
    %590 = vmatpush1.bf16.msra.mxu0 0
    %591 = vmatprep.mubr.bf16.mxu0 0
    %592 = vmatmul.mubr.bf16.gmra.mrb[0].mxu0 %v485
    %v593 = vpop.f32.mrb[0].mxu0
    %v594 = vadd.f32 %v509, %v593
    %v595 = vpop.f32.mrb[0].mxu0
    %v596 = vpop.f32.mrb[0].mxu0
    %v597 = vpop.f32.mrb[0].mxu0
    %598 = vdwg.mxu0
    %v599 = vsub.f32 0.0, %v594
    %v600 = vmul.f32 %v599, 1.442695
    %v601 = vpow.pop %v600
    %v602 = vadd.f32 %v601, 1.0
    %v603 = vrcp.pop %v602
    %v604 = vmul.f32 %v365, %v603
    %v605 = vadd.f32 %v604, %v140
    %v606 = vmax.f32 %v605, 0.0
    %v607 = vpack.c.bf16 %v606, %v606
    %s608 = scalar_lea.vmem [#allocation5], 320
    %v609 = vld [vmem:[%s608] sm:$0xf]
    %v610 = vld [vmem:[%s608 + $0x4] sm:$0xf]
    %v611 = vld [vmem:[%s608 + $0x8] sm:$0xf]
    %v612 = vld [vmem:[%s608 + $0xc] sm:$0xf]
    %v613 = vld [vmem:[%s608 + $0x10] sm:$0xf]
    %v614 = vld [vmem:[%s608 + $0x14] sm:$0xf]
    %v615 = vld [vmem:[%s608 + $0x18] sm:$0xf]
    %v616 = vld [vmem:[%s608 + $0x1c] sm:$0xf]
    %v617 = vld [vmem:[%s608 + $0x20] sm:$0xf]
    %v618 = vld [vmem:[%s608 + $0x24] sm:$0xf]
    %v619 = vld [vmem:[%s608 + $0x28] sm:$0xf]
    %v620 = vld [vmem:[%s608 + $0x2c] sm:$0xf]
    %v621 = vld [vmem:[%s608 + $0x30] sm:$0xf]
    %v622 = vld [vmem:[%s608 + $0x34] sm:$0xf]
    %v623 = vld [vmem:[%s608 + $0x38] sm:$0xf]
    %v624 = vld [vmem:[%s608 + $0x3c] sm:$0xf]
    %s625 = scalar_lea.vmem [#allocation7], 5
    %v626 = vld [vmem:[%s625] sm:$0x1]
    %v628 = vlaneseq
    %v629 = vshrl.u32 %v628, 7
    %v630 = vsub.s32 0, %v629
    %v631 = vrot.slane %v626, %v630
    %v649 = vunpack.c.l.b16 %v609
    %v650 = vunpack.c.l.b16 %v610
    %v651 = vunpack.c.l.b16 %v611
    %v652 = vunpack.c.l.b16 %v612
    %v653 = vunpack.c.l.b16 %v613
    %v654 = vunpack.c.l.b16 %v614
    %v655 = vunpack.c.l.b16 %v615
    %v656 = vunpack.c.l.b16 %v616
    %v657 = vunpack.c.l.b16 %v617
    %v658 = vunpack.c.l.b16 %v618
    %v659 = vunpack.c.l.b16 %v619
    %v660 = vunpack.c.l.b16 %v620
    %v661 = vunpack.c.l.b16 %v621
    %v662 = vunpack.c.l.b16 %v622
    %v663 = vunpack.c.l.b16 %v623
    %v664 = vunpack.c.l.b16 %v624
    %v665 = vpack.c.b16 %v650, %v649
    %v666 = vpack.c.b16 %v652, %v651
    %v667 = vpack.c.b16 %v654, %v653
    %v668 = vpack.c.b16 %v656, %v655
    %v669 = vpack.c.b16 %v658, %v657
    %v670 = vpack.c.b16 %v660, %v659
    %v671 = vpack.c.b16 %v662, %v661
    %v672 = vpack.c.b16 %v664, %v663
    %681 = vmatprep.subr.bf16.mxu0 0
    %682 = vmatpush1.bf16.msra.mxu0 %v665
    %683 = vmatprep.subr.bf16.mxu0 0
    %684 = vmatpush1.bf16.msra.mxu0 %v666
    %685 = vmatprep.subr.bf16.mxu0 0
    %686 = vmatpush1.bf16.msra.mxu0 %v667
    %687 = vmatprep.subr.bf16.mxu0 0
    %688 = vmatpush1.bf16.msra.mxu0 %v668
    %689 = vmatprep.subr.bf16.mxu0 0
    %690 = vmatpush1.bf16.msra.mxu0 %v669
    %691 = vmatprep.subr.bf16.mxu0 0
    %692 = vmatpush1.bf16.msra.mxu0 %v670
    %693 = vmatprep.subr.bf16.mxu0 0
    %694 = vmatpush1.bf16.msra.mxu0 %v671
    %695 = vmatprep.subr.bf16.mxu0 0
    %696 = vmatpush1.bf16.msra.mxu0 %v672
    %697 = vmatprep.subr.bf16.mxu0 0
    %698 = vmatpush1.bf16.msra.mxu0 0
    %699 = vmatprep.subr.bf16.mxu0 0
    %700 = vmatpush1.bf16.msra.mxu0 0
    %701 = vmatprep.subr.bf16.mxu0 0
    %702 = vmatpush1.bf16.msra.mxu0 0
    %703 = vmatprep.subr.bf16.mxu0 0
    %704 = vmatpush1.bf16.msra.mxu0 0
    %705 = vmatprep.subr.bf16.mxu0 0
    %706 = vmatpush1.bf16.msra.mxu0 0
    %707 = vmatprep.subr.bf16.mxu0 0
    %708 = vmatpush1.bf16.msra.mxu0 0
    %709 = vmatprep.subr.bf16.mxu0 0
    %710 = vmatpush1.bf16.msra.mxu0 0
    %711 = vmatprep.subr.bf16.mxu0 0
    %712 = vmatpush1.bf16.msra.mxu0 0
    %713 = vmatprep.mubr.bf16.mxu0 0
    %714 = vmatmul.mubr.bf16.gmra.mrb[0].mxu0 %v607
    %v715 = vpop.f32.mrb[0].mxu0
    %v716 = vadd.f32 %v631, %v715
    %v717 = vpop.f32.mrb[0].mxu0
    %v718 = vpop.f32.mrb[0].mxu0
    %v719 = vpop.f32.mrb[0].mxu0
    %720 = vdwg.mxu0
    %v721 = vmax.f32 %v716, 0.0
    %v722 = vpack.c.bf16 %v721, %v721
    %s723 = scalar_lea.vmem [#allocation5], 384
    %v724 = vld [vmem:[%s723] sm:$0xf]
    %v725 = vld [vmem:[%s723 + $0x4] sm:$0xf]
    %v726 = vld [vmem:[%s723 + $0x8] sm:$0xf]
    %v727 = vld [vmem:[%s723 + $0xc] sm:$0xf]
    %v728 = vld [vmem:[%s723 + $0x10] sm:$0xf]
    %v729 = vld [vmem:[%s723 + $0x14] sm:$0xf]
    %v730 = vld [vmem:[%s723 + $0x18] sm:$0xf]
    %v731 = vld [vmem:[%s723 + $0x1c] sm:$0xf]
    %v732 = vld [vmem:[%s723 + $0x20] sm:$0xf]
    %v733 = vld [vmem:[%s723 + $0x24] sm:$0xf]
    %v734 = vld [vmem:[%s723 + $0x28] sm:$0xf]
    %v735 = vld [vmem:[%s723 + $0x2c] sm:$0xf]
    %v736 = vld [vmem:[%s723 + $0x30] sm:$0xf]
    %v737 = vld [vmem:[%s723 + $0x34] sm:$0xf]
    %v738 = vld [vmem:[%s723 + $0x38] sm:$0xf]
    %v739 = vld [vmem:[%s723 + $0x3c] sm:$0xf]
    %s740 = scalar_lea.vmem [#allocation7], 6
    %v741 = vld [vmem:[%s740] sm:$0x1]
    %v743 = vlaneseq
    %v744 = vshrl.u32 %v743, 7
    %v745 = vsub.s32 0, %v744
    %v746 = vrot.slane %v741, %v745
    %v764 = vunpack.c.l.b16 %v724
    %v765 = vunpack.c.l.b16 %v725
    %v766 = vunpack.c.l.b16 %v726
    %v767 = vunpack.c.l.b16 %v727
    %v768 = vunpack.c.l.b16 %v728
    %v769 = vunpack.c.l.b16 %v729
    %v770 = vunpack.c.l.b16 %v730
    %v771 = vunpack.c.l.b16 %v731
    %v772 = vunpack.c.l.b16 %v732
    %v773 = vunpack.c.l.b16 %v733
    %v774 = vunpack.c.l.b16 %v734
    %v775 = vunpack.c.l.b16 %v735
    %v776 = vunpack.c.l.b16 %v736
    %v777 = vunpack.c.l.b16 %v737
    %v778 = vunpack.c.l.b16 %v738
    %v779 = vunpack.c.l.b16 %v739
    %v780 = vpack.c.b16 %v765, %v764
    %v781 = vpack.c.b16 %v767, %v766
    %v782 = vpack.c.b16 %v769, %v768
    %v783 = vpack.c.b16 %v771, %v770
    %v784 = vpack.c.b16 %v773, %v772
    %v785 = vpack.c.b16 %v775, %v774
    %v786 = vpack.c.b16 %v777, %v776
    %v787 = vpack.c.b16 %v779, %v778
    %796 = vmatprep.subr.bf16.mxu0 0
    %797 = vmatpush1.bf16.msra.mxu0 %v780
    %798 = vmatprep.subr.bf16.mxu0 0
    %799 = vmatpush1.bf16.msra.mxu0 %v781
    %800 = vmatprep.subr.bf16.mxu0 0
    %801 = vmatpush1.bf16.msra.mxu0 %v782
    %802 = vmatprep.subr.bf16.mxu0 0
    %803 = vmatpush1.bf16.msra.mxu0 %v783
    %804 = vmatprep.subr.bf16.mxu0 0
    %805 = vmatpush1.bf16.msra.mxu0 %v784
    %806 = vmatprep.subr.bf16.mxu0 0
    %807 = vmatpush1.bf16.msra.mxu0 %v785
    %808 = vmatprep.subr.bf16.mxu0 0
    %809 = vmatpush1.bf16.msra.mxu0 %v786
    %810 = vmatprep.subr.bf16.mxu0 0
    %811 = vmatpush1.bf16.msra.mxu0 %v787
    %812 = vmatprep.subr.bf16.mxu0 0
    %813 = vmatpush1.bf16.msra.mxu0 0
    %814 = vmatprep.subr.bf16.mxu0 0
    %815 = vmatpush1.bf16.msra.mxu0 0
    %816 = vmatprep.subr.bf16.mxu0 0
    %817 = vmatpush1.bf16.msra.mxu0 0
    %818 = vmatprep.subr.bf16.mxu0 0
    %819 = vmatpush1.bf16.msra.mxu0 0
    %820 = vmatprep.subr.bf16.mxu0 0
    %821 = vmatpush1.bf16.msra.mxu0 0
    %822 = vmatprep.subr.bf16.mxu0 0
    %823 = vmatpush1.bf16.msra.mxu0 0
    %824 = vmatprep.subr.bf16.mxu0 0
    %825 = vmatpush1.bf16.msra.mxu0 0
    %826 = vmatprep.subr.bf16.mxu0 0
    %827 = vmatpush1.bf16.msra.mxu0 0
    %828 = vmatprep.mubr.bf16.mxu0 0
    %829 = vmatmul.mubr.bf16.gmra.mrb[0].mxu0 %v722
    %v830 = vpop.f32.mrb[0].mxu0
    %v831 = vadd.f32 %v746, %v830
    %v832 = vpop.f32.mrb[0].mxu0
    %v833 = vpop.f32.mrb[0].mxu0
    %v834 = vpop.f32.mrb[0].mxu0
    %835 = vdwg.mxu0
    %v836 = vpack.c.bf16 %v831, %v831
    %s837 = scalar_lea.vmem [#allocation5], 448
    %v838 = vld [vmem:[%s837] sm:$0xf]
    %v839 = vld [vmem:[%s837 + $0x4] sm:$0xf]
    %v840 = vld [vmem:[%s837 + $0x8] sm:$0xf]
    %v841 = vld [vmem:[%s837 + $0xc] sm:$0xf]
    %v842 = vld [vmem:[%s837 + $0x10] sm:$0xf]
    %v843 = vld [vmem:[%s837 + $0x14] sm:$0xf]
    %v844 = vld [vmem:[%s837 + $0x18] sm:$0xf]
    %v845 = vld [vmem:[%s837 + $0x1c] sm:$0xf]
    %v846 = vld [vmem:[%s837 + $0x20] sm:$0xf]
    %v847 = vld [vmem:[%s837 + $0x24] sm:$0xf]
    %v848 = vld [vmem:[%s837 + $0x28] sm:$0xf]
    %v849 = vld [vmem:[%s837 + $0x2c] sm:$0xf]
    %v850 = vld [vmem:[%s837 + $0x30] sm:$0xf]
    %v851 = vld [vmem:[%s837 + $0x34] sm:$0xf]
    %v852 = vld [vmem:[%s837 + $0x38] sm:$0xf]
    %v853 = vld [vmem:[%s837 + $0x3c] sm:$0xf]
    %s854 = scalar_lea.vmem [#allocation7], 7
    %v855 = vld [vmem:[%s854] sm:$0x1]
    %v857 = vlaneseq
    %v858 = vshrl.u32 %v857, 7
    %v859 = vsub.s32 0, %v858
    %v860 = vrot.slane %v855, %v859
    %v878 = vunpack.c.l.b16 %v838
    %v879 = vunpack.c.l.b16 %v839
    %v880 = vunpack.c.l.b16 %v840
    %v881 = vunpack.c.l.b16 %v841
    %v882 = vunpack.c.l.b16 %v842
    %v883 = vunpack.c.l.b16 %v843
    %v884 = vunpack.c.l.b16 %v844
    %v885 = vunpack.c.l.b16 %v845
    %v886 = vunpack.c.l.b16 %v846
    %v887 = vunpack.c.l.b16 %v847
    %v888 = vunpack.c.l.b16 %v848
    %v889 = vunpack.c.l.b16 %v849
    %v890 = vunpack.c.l.b16 %v850
    %v891 = vunpack.c.l.b16 %v851
    %v892 = vunpack.c.l.b16 %v852
    %v893 = vunpack.c.l.b16 %v853
    %v894 = vpack.c.b16 %v879, %v878
    %v895 = vpack.c.b16 %v881, %v880
    %v896 = vpack.c.b16 %v883, %v882
    %v897 = vpack.c.b16 %v885, %v884
    %v898 = vpack.c.b16 %v887, %v886
    %v899 = vpack.c.b16 %v889, %v888
    %v900 = vpack.c.b16 %v891, %v890
    %v901 = vpack.c.b16 %v893, %v892
    %910 = vmatprep.subr.bf16.mxu0 0
    %911 = vmatpush1.bf16.msra.mxu0 %v894
    %912 = vmatprep.subr.bf16.mxu0 0
    %913 = vmatpush1.bf16.msra.mxu0 %v895
    %914 = vmatprep.subr.bf16.mxu0 0
    %915 = vmatpush1.bf16.msra.mxu0 %v896
    %916 = vmatprep.subr.bf16.mxu0 0
    %917 = vmatpush1.bf16.msra.mxu0 %v897
    %918 = vmatprep.subr.bf16.mxu0 0
    %919 = vmatpush1.bf16.msra.mxu0 %v898
    %920 = vmatprep.subr.bf16.mxu0 0
    %921 = vmatpush1.bf16.msra.mxu0 %v899
    %922 = vmatprep.subr.bf16.mxu0 0
    %923 = vmatpush1.bf16.msra.mxu0 %v900
    %924 = vmatprep.subr.bf16.mxu0 0
    %925 = vmatpush1.bf16.msra.mxu0 %v901
    %926 = vmatprep.subr.bf16.mxu0 0
    %927 = vmatpush1.bf16.msra.mxu0 0
    %928 = vmatprep.subr.bf16.mxu0 0
    %929 = vmatpush1.bf16.msra.mxu0 0
    %930 = vmatprep.subr.bf16.mxu0 0
    %931 = vmatpush1.bf16.msra.mxu0 0
    %932 = vmatprep.subr.bf16.mxu0 0
    %933 = vmatpush1.bf16.msra.mxu0 0
    %934 = vmatprep.subr.bf16.mxu0 0
    %935 = vmatpush1.bf16.msra.mxu0 0
    %936 = vmatprep.subr.bf16.mxu0 0
    %937 = vmatpush1.bf16.msra.mxu0 0
    %938 = vmatprep.subr.bf16.mxu0 0
    %939 = vmatpush1.bf16.msra.mxu0 0
    %940 = vmatprep.subr.bf16.mxu0 0
    %941 = vmatpush1.bf16.msra.mxu0 0
    %942 = vmatprep.mubr.bf16.mxu0 0
    %943 = vmatmul.mubr.bf16.gmra.mrb[0].mxu0 %v836
    %v944 = vpop.f32.mrb[0].mxu0
    %v945 = vadd.f32 %v860, %v944
    %v946 = vpop.f32.mrb[0].mxu0
    %v947 = vpop.f32.mrb[0].mxu0
    %v948 = vpop.f32.mrb[0].mxu0
    %949 = vdwg.mxu0
    %v950 = vmax.f32 %v945, 0.0
    %v951 = vpack.c.bf16 %v950, %v950
    %s952 = scalar_lea.vmem [#allocation5], 512
    %v953 = vld [vmem:[%s952] sm:$0xf]
    %v954 = vld [vmem:[%s952 + $0x4] sm:$0xf]
    %v955 = vld [vmem:[%s952 + $0x8] sm:$0xf]
    %v956 = vld [vmem:[%s952 + $0xc] sm:$0xf]
    %v957 = vld [vmem:[%s952 + $0x10] sm:$0xf]
    %v958 = vld [vmem:[%s952 + $0x14] sm:$0xf]
    %v959 = vld [vmem:[%s952 + $0x18] sm:$0xf]
    %v960 = vld [vmem:[%s952 + $0x1c] sm:$0xf]
    %v961 = vld [vmem:[%s952 + $0x20] sm:$0xf]
    %v962 = vld [vmem:[%s952 + $0x24] sm:$0xf]
    %v963 = vld [vmem:[%s952 + $0x28] sm:$0xf]
    %v964 = vld [vmem:[%s952 + $0x2c] sm:$0xf]
    %v965 = vld [vmem:[%s952 + $0x30] sm:$0xf]
    %v966 = vld [vmem:[%s952 + $0x34] sm:$0xf]
    %v967 = vld [vmem:[%s952 + $0x38] sm:$0xf]
    %v968 = vld [vmem:[%s952 + $0x3c] sm:$0xf]
    %s969 = scalar_lea.vmem [#allocation7], 8
    %v970 = vld [vmem:[%s969] sm:$0x1]
    %v972 = vlaneseq
    %v973 = vshrl.u32 %v972, 7
    %v974 = vsub.s32 0, %v973
    %v975 = vrot.slane %v970, %v974
    %v993 = vunpack.c.l.b16 %v953
    %v994 = vunpack.c.l.b16 %v954
    %v995 = vunpack.c.l.b16 %v955
    %v996 = vunpack.c.l.b16 %v956
    %v997 = vunpack.c.l.b16 %v957
    %v998 = vunpack.c.l.b16 %v958
    %v999 = vunpack.c.l.b16 %v959
    %v1000 = vunpack.c.l.b16 %v960
    %v1001 = vunpack.c.l.b16 %v961
    %v1002 = vunpack.c.l.b16 %v962
    %v1003 = vunpack.c.l.b16 %v963
    %v1004 = vunpack.c.l.b16 %v964
    %v1005 = vunpack.c.l.b16 %v965
    %v1006 = vunpack.c.l.b16 %v966
    %v1007 = vunpack.c.l.b16 %v967
    %v1008 = vunpack.c.l.b16 %v968
    %v1009 = vpack.c.b16 %v994, %v993
    %v1010 = vpack.c.b16 %v996, %v995
    %v1011 = vpack.c.b16 %v998, %v997
    %v1012 = vpack.c.b16 %v1000, %v999
    %v1013 = vpack.c.b16 %v1002, %v1001
    %v1014 = vpack.c.b16 %v1004, %v1003
    %v1015 = vpack.c.b16 %v1006, %v1005
    %v1016 = vpack.c.b16 %v1008, %v1007
    %1025 = vmatprep.subr.bf16.mxu0 0
    %1026 = vmatpush1.bf16.msra.mxu0 %v1009
    %1027 = vmatprep.subr.bf16.mxu0 0
    %1028 = vmatpush1.bf16.msra.mxu0 %v1010
    %1029 = vmatprep.subr.bf16.mxu0 0
    %1030 = vmatpush1.bf16.msra.mxu0 %v1011
    %1031 = vmatprep.subr.bf16.mxu0 0
    %1032 = vmatpush1.bf16.msra.mxu0 %v1012
    %1033 = vmatprep.subr.bf16.mxu0 0
    %1034 = vmatpush1.bf16.msra.mxu0 %v1013
    %1035 = vmatprep.subr.bf16.mxu0 0
    %1036 = vmatpush1.bf16.msra.mxu0 %v1014
    %1037 = vmatprep.subr.bf16.mxu0 0
    %1038 = vmatpush1.bf16.msra.mxu0 %v1015
    %1039 = vmatprep.subr.bf16.mxu0 0
    %1040 = vmatpush1.bf16.msra.mxu0 %v1016
    %1041 = vmatprep.subr.bf16.mxu0 0
    %1042 = vmatpush1.bf16.msra.mxu0 0
    %1043 = vmatprep.subr.bf16.mxu0 0
    %1044 = vmatpush1.bf16.msra.mxu0 0
    %1045 = vmatprep.subr.bf16.mxu0 0
    %1046 = vmatpush1.bf16.msra.mxu0 0
    %1047 = vmatprep.subr.bf16.mxu0 0
    %1048 = vmatpush1.bf16.msra.mxu0 0
    %1049 = vmatprep.subr.bf16.mxu0 0
    %1050 = vmatpush1.bf16.msra.mxu0 0
    %1051 = vmatprep.subr.bf16.mxu0 0
    %1052 = vmatpush1.bf16.msra.mxu0 0
    %1053 = vmatprep.subr.bf16.mxu0 0
    %1054 = vmatpush1.bf16.msra.mxu0 0
    %1055 = vmatprep.subr.bf16.mxu0 0
    %1056 = vmatpush1.bf16.msra.mxu0 0
    %1057 = vmatprep.mubr.bf16.mxu0 0
    %1058 = vmatmul.mubr.bf16.gmra.mrb[0].mxu0 %v951
    %v1059 = vpop.f32.mrb[0].mxu0
    %v1060 = vadd.f32 %v975, %v1059
    %v1061 = vpop.f32.mrb[0].mxu0
    %v1062 = vpop.f32.mrb[0].mxu0
    %v1063 = vpop.f32.mrb[0].mxu0
    %1064 = vdwg.mxu0
    %v1065 = vsub.f32 0.0, %v1060
    %v1066 = vmul.f32 %v1065, 1.442695
    %v1067 = vpow.pop %v1066
    %v1068 = vadd.f32 %v1067, 1.0
    %v1069 = vrcp.pop %v1068
    %v1070 = vmul.f32 %v831, %v1069
    %v1071 = vadd.f32 %v1070, %v606
    %v1072 = vmax.f32 %v1071, 0.0
    %v1073 = vpack.c.bf16 %v1072, %v1072
    %s1074 = scalar_lea.vmem [#allocation5], 576
    %v1075 = vld [vmem:[%s1074] sm:$0xf]
    %v1076 = vld [vmem:[%s1074 + $0x4] sm:$0xf]
    %v1077 = vld [vmem:[%s1074 + $0x8] sm:$0xf]
    %v1078 = vld [vmem:[%s1074 + $0xc] sm:$0xf]
    %v1079 = vld [vmem:[%s1074 + $0x10] sm:$0xf]
    %v1080 = vld [vmem:[%s1074 + $0x14] sm:$0xf]
    %v1081 = vld [vmem:[%s1074 + $0x18] sm:$0xf]
    %v1082 = vld [vmem:[%s1074 + $0x1c] sm:$0xf]
    %v1083 = vld [vmem:[%s1074 + $0x20] sm:$0xf]
    %v1084 = vld [vmem:[%s1074 + $0x24] sm:$0xf]
    %v1085 = vld [vmem:[%s1074 + $0x28] sm:$0xf]
    %v1086 = vld [vmem:[%s1074 + $0x2c] sm:$0xf]
    %v1087 = vld [vmem:[%s1074 + $0x30] sm:$0xf]
    %v1088 = vld [vmem:[%s1074 + $0x34] sm:$0xf]
    %v1089 = vld [vmem:[%s1074 + $0x38] sm:$0xf]
    %v1090 = vld [vmem:[%s1074 + $0x3c] sm:$0xf]
    %s1091 = scalar_lea.vmem [#allocation7], 9
    %v1092 = vld [vmem:[%s1091] sm:$0x1]
    %v1094 = vlaneseq
    %v1095 = vshrl.u32 %v1094, 7
    %v1096 = vsub.s32 0, %v1095
    %v1097 = vrot.slane %v1092, %v1096
    %v1115 = vunpack.c.l.b16 %v1075
    %v1116 = vunpack.c.l.b16 %v1076
    %v1117 = vunpack.c.l.b16 %v1077
    %v1118 = vunpack.c.l.b16 %v1078
    %v1119 = vunpack.c.l.b16 %v1079
    %v1120 = vunpack.c.l.b16 %v1080
    %v1121 = vunpack.c.l.b16 %v1081
    %v1122 = vunpack.c.l.b16 %v1082
    %v1123 = vunpack.c.l.b16 %v1083
    %v1124 = vunpack.c.l.b16 %v1084
    %v1125 = vunpack.c.l.b16 %v1085
    %v1126 = vunpack.c.l.b16 %v1086
    %v1127 = vunpack.c.l.b16 %v1087
    %v1128 = vunpack.c.l.b16 %v1088
    %v1129 = vunpack.c.l.b16 %v1089
    %v1130 = vunpack.c.l.b16 %v1090
    %v1131 = vpack.c.b16 %v1116, %v1115
    %v1132 = vpack.c.b16 %v1118, %v1117
    %v1133 = vpack.c.b16 %v1120, %v1119
    %v1134 = vpack.c.b16 %v1122, %v1121
    %v1135 = vpack.c.b16 %v1124, %v1123
    %v1136 = vpack.c.b16 %v1126, %v1125
    %v1137 = vpack.c.b16 %v1128, %v1127
    %v1138 = vpack.c.b16 %v1130, %v1129
    %1147 = vmatprep.subr.bf16.mxu0 0
    %1148 = vmatpush1.bf16.msra.mxu0 %v1131
    %1149 = vmatprep.subr.bf16.mxu0 0
    %1150 = vmatpush1.bf16.msra.mxu0 %v1132
    %1151 = vmatprep.subr.bf16.mxu0 0
    %1152 = vmatpush1.bf16.msra.mxu0 %v1133
    %1153 = vmatprep.subr.bf16.mxu0 0
    %1154 = vmatpush1.bf16.msra.mxu0 %v1134
    %1155 = vmatprep.subr.bf16.mxu0 0
    %1156 = vmatpush1.bf16.msra.mxu0 %v1135
    %1157 = vmatprep.subr.bf16.mxu0 0
    %1158 = vmatpush1.bf16.msra.mxu0 %v1136
    %1159 = vmatprep.subr.bf16.mxu0 0
    %1160 = vmatpush1.bf16.msra.mxu0 %v1137
    %1161 = vmatprep.subr.bf16.mxu0 0
    %1162 = vmatpush1.bf16.msra.mxu0 %v1138
    %1163 = vmatprep.subr.bf16.mxu0 0
    %1164 = vmatpush1.bf16.msra.mxu0 0
    %1165 = vmatprep.subr.bf16.mxu0 0
    %1166 = vmatpush1.bf16.msra.mxu0 0
    %1167 = vmatprep.subr.bf16.mxu0 0
    %1168 = vmatpush1.bf16.msra.mxu0 0
    %1169 = vmatprep.subr.bf16.mxu0 0
    %1170 = vmatpush1.bf16.msra.mxu0 0
    %1171 = vmatprep.subr.bf16.mxu0 0
    %1172 = vmatpush1.bf16.msra.mxu0 0
    %1173 = vmatprep.subr.bf16.mxu0 0
    %1174 = vmatpush1.bf16.msra.mxu0 0
    %1175 = vmatprep.subr.bf16.mxu0 0
    %1176 = vmatpush1.bf16.msra.mxu0 0
    %1177 = vmatprep.subr.bf16.mxu0 0
    %1178 = vmatpush1.bf16.msra.mxu0 0
    %1179 = vmatprep.mubr.bf16.mxu0 0
    %1180 = vmatmul.mubr.bf16.gmra.mrb[0].mxu0 %v1073
    %v1181 = vpop.f32.mrb[0].mxu0
    %v1182 = vadd.f32 %v1097, %v1181
    %v1183 = vpop.f32.mrb[0].mxu0
    %v1184 = vpop.f32.mrb[0].mxu0
    %v1185 = vpop.f32.mrb[0].mxu0
    %1186 = vdwg.mxu0
    %v1187 = vmax.f32 %v1182, 0.0
    %v1188 = vpack.c.bf16 %v1187, %v1187
    %s1189 = scalar_lea.vmem [#allocation5], 640
    %v1190 = vld [vmem:[%s1189] sm:$0xf]
    %v1191 = vld [vmem:[%s1189 + $0x4] sm:$0xf]
    %v1192 = vld [vmem:[%s1189 + $0x8] sm:$0xf]
    %v1193 = vld [vmem:[%s1189 + $0xc] sm:$0xf]
    %v1194 = vld [vmem:[%s1189 + $0x10] sm:$0xf]
    %v1195 = vld [vmem:[%s1189 + $0x14] sm:$0xf]
    %v1196 = vld [vmem:[%s1189 + $0x18] sm:$0xf]
    %v1197 = vld [vmem:[%s1189 + $0x1c] sm:$0xf]
    %v1198 = vld [vmem:[%s1189 + $0x20] sm:$0xf]
    %v1199 = vld [vmem:[%s1189 + $0x24] sm:$0xf]
    %v1200 = vld [vmem:[%s1189 + $0x28] sm:$0xf]
    %v1201 = vld [vmem:[%s1189 + $0x2c] sm:$0xf]
    %v1202 = vld [vmem:[%s1189 + $0x30] sm:$0xf]
    %v1203 = vld [vmem:[%s1189 + $0x34] sm:$0xf]
    %v1204 = vld [vmem:[%s1189 + $0x38] sm:$0xf]
    %v1205 = vld [vmem:[%s1189 + $0x3c] sm:$0xf]
    %s1206 = scalar_lea.vmem [#allocation7], 10
    %v1207 = vld [vmem:[%s1206] sm:$0x1]
    %v1209 = vlaneseq
    %v1210 = vshrl.u32 %v1209, 7
    %v1211 = vsub.s32 0, %v1210
    %v1212 = vrot.slane %v1207, %v1211
    %v1230 = vunpack.c.l.b16 %v1190
    %v1231 = vunpack.c.l.b16 %v1191
    %v1232 = vunpack.c.l.b16 %v1192
    %v1233 = vunpack.c.l.b16 %v1193
    %v1234 = vunpack.c.l.b16 %v1194
    %v1235 = vunpack.c.l.b16 %v1195
    %v1236 = vunpack.c.l.b16 %v1196
    %v1237 = vunpack.c.l.b16 %v1197
    %v1238 = vunpack.c.l.b16 %v1198
    %v1239 = vunpack.c.l.b16 %v1199
    %v1240 = vunpack.c.l.b16 %v1200
    %v1241 = vunpack.c.l.b16 %v1201
    %v1242 = vunpack.c.l.b16 %v1202
    %v1243 = vunpack.c.l.b16 %v1203
    %v1244 = vunpack.c.l.b16 %v1204
    %v1245 = vunpack.c.l.b16 %v1205
    %v1246 = vpack.c.b16 %v1231, %v1230
    %v1247 = vpack.c.b16 %v1233, %v1232
    %v1248 = vpack.c.b16 %v1235, %v1234
    %v1249 = vpack.c.b16 %v1237, %v1236
    %v1250 = vpack.c.b16 %v1239, %v1238
    %v1251 = vpack.c.b16 %v1241, %v1240
    %v1252 = vpack.c.b16 %v1243, %v1242
    %v1253 = vpack.c.b16 %v1245, %v1244
    %1262 = vmatprep.subr.bf16.mxu0 0
    %1263 = vmatpush1.bf16.msra.mxu0 %v1246
    %1264 = vmatprep.subr.bf16.mxu0 0
    %1265 = vmatpush1.bf16.msra.mxu0 %v1247
    %1266 = vmatprep.subr.bf16.mxu0 0
    %1267 = vmatpush1.bf16.msra.mxu0 %v1248
    %1268 = vmatprep.subr.bf16.mxu0 0
    %1269 = vmatpush1.bf16.msra.mxu0 %v1249
    %1270 = vmatprep.subr.bf16.mxu0 0
    %1271 = vmatpush1.bf16.msra.mxu0 %v1250
    %1272 = vmatprep.subr.bf16.mxu0 0
    %1273 = vmatpush1.bf16.msra.mxu0 %v1251
    %1274 = vmatprep.subr.bf16.mxu0 0
    %1275 = vmatpush1.bf16.msra.mxu0 %v1252
    %1276 = vmatprep.subr.bf16.mxu0 0
    %1277 = vmatpush1.bf16.msra.mxu0 %v1253
    %1278 = vmatprep.subr.bf16.mxu0 0
    %1279 = vmatpush1.bf16.msra.mxu0 0
    %1280 = vmatprep.subr.bf16.mxu0 0
    %1281 = vmatpush1.bf16.msra.mxu0 0
    %1282 = vmatprep.subr.bf16.mxu0 0
    %1283 = vmatpush1.bf16.msra.mxu0 0
    %1284 = vmatprep.subr.bf16.mxu0 0
    %1285 = vmatpush1.bf16.msra.mxu0 0
    %1286 = vmatprep.subr.bf16.mxu0 0
    %1287 = vmatpush1.bf16.msra.mxu0 0
    %1288 = vmatprep.subr.bf16.mxu0 0
    %1289 = vmatpush1.bf16.msra.mxu0 0
    %1290 = vmatprep.subr.bf16.mxu0 0
    %1291 = vmatpush1.bf16.msra.mxu0 0
    %1292 = vmatprep.subr.bf16.mxu0 0
    %1293 = vmatpush1.bf16.msra.mxu0 0
    %1294 = vmatprep.mubr.bf16.mxu0 0
    %1295 = vmatmul.mubr.bf16.gmra.mrb[0].mxu0 %v1188
    %v1296 = vpop.f32.mrb[0].mxu0
    %v1297 = vadd.f32 %v1212, %v1296
    %v1298 = vpop.f32.mrb[0].mxu0
    %v1299 = vpop.f32.mrb[0].mxu0
    %v1300 = vpop.f32.mrb[0].mxu0
    %1301 = vdwg.mxu0
    %v1302 = vmax.f32 %v1297, 0.0
    %v1303 = vpack.c.bf16 %v1302, %v1302
    %s1304 = scalar_lea.vmem [#allocation5], 704
    %v1305 = vld [vmem:[%s1304] sm:$0xf]
    %v1306 = vld [vmem:[%s1304 + $0x4] sm:$0xf]
    %v1307 = vld [vmem:[%s1304 + $0x8] sm:$0xf]
    %v1308 = vld [vmem:[%s1304 + $0xc] sm:$0xf]
    %v1309 = vld [vmem:[%s1304 + $0x10] sm:$0xf]
    %v1310 = vld [vmem:[%s1304 + $0x14] sm:$0xf]
    %v1311 = vld [vmem:[%s1304 + $0x18] sm:$0xf]
    %v1312 = vld [vmem:[%s1304 + $0x1c] sm:$0xf]
    %v1313 = vld [vmem:[%s1304 + $0x20] sm:$0xf]
    %v1314 = vld [vmem:[%s1304 + $0x24] sm:$0xf]
    %v1315 = vld [vmem:[%s1304 + $0x28] sm:$0xf]
    %v1316 = vld [vmem:[%s1304 + $0x2c] sm:$0xf]
    %v1317 = vld [vmem:[%s1304 + $0x30] sm:$0xf]
    %v1318 = vld [vmem:[%s1304 + $0x34] sm:$0xf]
    %v1319 = vld [vmem:[%s1304 + $0x38] sm:$0xf]
    %v1320 = vld [vmem:[%s1304 + $0x3c] sm:$0xf]
    %s1321 = scalar_lea.vmem [#allocation7], 11
    %v1322 = vld [vmem:[%s1321] sm:$0x1]
    %v1324 = vlaneseq
    %v1325 = vshrl.u32 %v1324, 7
    %v1326 = vsub.s32 0, %v1325
    %v1327 = vrot.slane %v1322, %v1326
    %v1345 = vunpack.c.l.b16 %v1305
    %v1346 = vunpack.c.l.b16 %v1306
    %v1347 = vunpack.c.l.b16 %v1307
    %v1348 = vunpack.c.l.b16 %v1308
    %v1349 = vunpack.c.l.b16 %v1309
    %v1350 = vunpack.c.l.b16 %v1310
    %v1351 = vunpack.c.l.b16 %v1311
    %v1352 = vunpack.c.l.b16 %v1312
    %v1353 = vunpack.c.l.b16 %v1313
    %v1354 = vunpack.c.l.b16 %v1314
    %v1355 = vunpack.c.l.b16 %v1315
    %v1356 = vunpack.c.l.b16 %v1316
    %v1357 = vunpack.c.l.b16 %v1317
    %v1358 = vunpack.c.l.b16 %v1318
    %v1359 = vunpack.c.l.b16 %v1319
    %v1360 = vunpack.c.l.b16 %v1320
    %v1361 = vpack.c.b16 %v1346, %v1345
    %v1362 = vpack.c.b16 %v1348, %v1347
    %v1363 = vpack.c.b16 %v1350, %v1349
    %v1364 = vpack.c.b16 %v1352, %v1351
    %v1365 = vpack.c.b16 %v1354, %v1353
    %v1366 = vpack.c.b16 %v1356, %v1355
    %v1367 = vpack.c.b16 %v1358, %v1357
    %v1368 = vpack.c.b16 %v1360, %v1359
    %1377 = vmatprep.subr.bf16.mxu0 0
    %1378 = vmatpush1.bf16.msra.mxu0 %v1361
    %1379 = vmatprep.subr.bf16.mxu0 0
    %1380 = vmatpush1.bf16.msra.mxu0 %v1362
    %1381 = vmatprep.subr.bf16.mxu0 0
    %1382 = vmatpush1.bf16.msra.mxu0 %v1363
    %1383 = vmatprep.subr.bf16.mxu0 0
    %1384 = vmatpush1.bf16.msra.mxu0 %v1364
    %1385 = vmatprep.subr.bf16.mxu0 0
    %1386 = vmatpush1.bf16.msra.mxu0 %v1365
    %1387 = vmatprep.subr.bf16.mxu0 0
    %1388 = vmatpush1.bf16.msra.mxu0 %v1366
    %1389 = vmatprep.subr.bf16.mxu0 0
    %1390 = vmatpush1.bf16.msra.mxu0 %v1367
    %1391 = vmatprep.subr.bf16.mxu0 0
    %1392 = vmatpush1.bf16.msra.mxu0 %v1368
    %1393 = vmatprep.subr.bf16.mxu0 0
    %1394 = vmatpush1.bf16.msra.mxu0 0
    %1395 = vmatprep.subr.bf16.mxu0 0
    %1396 = vmatpush1.bf16.msra.mxu0 0
    %1397 = vmatprep.subr.bf16.mxu0 0
    %1398 = vmatpush1.bf16.msra.mxu0 0
    %1399 = vmatprep.subr.bf16.mxu0 0
    %1400 = vmatpush1.bf16.msra.mxu0 0
    %1401 = vmatprep.subr.bf16.mxu0 0
    %1402 = vmatpush1.bf16.msra.mxu0 0
    %1403 = vmatprep.subr.bf16.mxu0 0
    %1404 = vmatpush1.bf16.msra.mxu0 0
    %1405 = vmatprep.subr.bf16.mxu0 0
    %1406 = vmatpush1.bf16.msra.mxu0 0
    %1407 = vmatprep.subr.bf16.mxu0 0
    %1408 = vmatpush1.bf16.msra.mxu0 0
    %1409 = vmatprep.mubr.bf16.mxu0 0
    %1410 = vmatmul.mubr.bf16.gmra.mrb[0].mxu0 %v1303
    %v1411 = vpop.f32.mrb[0].mxu0
    %v1412 = vadd.f32 %v1327, %v1411
    %v1413 = vpop.f32.mrb[0].mxu0
    %v1414 = vpop.f32.mrb[0].mxu0
    %v1415 = vpop.f32.mrb[0].mxu0
    %1416 = vdwg.mxu0
    %v1417 = vmax.f32 %v1412, 0.0
    %v1418 = vpack.c.bf16 %v1417, %v1417
    %s1419 = scalar_lea.vmem [#allocation5], 768
    %v1420 = vld [vmem:[%s1419] sm:$0xf]
    %v1421 = vld [vmem:[%s1419 + $0x4] sm:$0xf]
    %v1422 = vld [vmem:[%s1419 + $0x8] sm:$0xf]
    %v1423 = vld [vmem:[%s1419 + $0xc] sm:$0xf]
    %v1424 = vld [vmem:[%s1419 + $0x10] sm:$0xf]
    %v1425 = vld [vmem:[%s1419 + $0x14] sm:$0xf]
    %v1426 = vld [vmem:[%s1419 + $0x18] sm:$0xf]
    %v1427 = vld [vmem:[%s1419 + $0x1c] sm:$0xf]
    %v1428 = vld [vmem:[%s1419 + $0x20] sm:$0xf]
    %v1429 = vld [vmem:[%s1419 + $0x24] sm:$0xf]
    %v1430 = vld [vmem:[%s1419 + $0x28] sm:$0xf]
    %v1431 = vld [vmem:[%s1419 + $0x2c] sm:$0xf]
    %v1432 = vld [vmem:[%s1419 + $0x30] sm:$0xf]
    %v1433 = vld [vmem:[%s1419 + $0x34] sm:$0xf]
    %v1434 = vld [vmem:[%s1419 + $0x38] sm:$0xf]
    %v1435 = vld [vmem:[%s1419 + $0x3c] sm:$0xf]
    %s1436 = scalar_lea.vmem [#allocation7], 12
    %v1437 = vld [vmem:[%s1436] sm:$0x1]
    %v1439 = vlaneseq
    %v1440 = vshrl.u32 %v1439, 7
    %v1441 = vsub.s32 0, %v1440
    %v1442 = vrot.slane %v1437, %v1441
    %v1460 = vunpack.c.l.b16 %v1420
    %v1461 = vunpack.c.l.b16 %v1421
    %v1462 = vunpack.c.l.b16 %v1422
    %v1463 = vunpack.c.l.b16 %v1423
    %v1464 = vunpack.c.l.b16 %v1424
    %v1465 = vunpack.c.l.b16 %v1425
    %v1466 = vunpack.c.l.b16 %v1426
    %v1467 = vunpack.c.l.b16 %v1427
    %v1468 = vunpack.c.l.b16 %v1428
    %v1469 = vunpack.c.l.b16 %v1429
    %v1470 = vunpack.c.l.b16 %v1430
    %v1471 = vunpack.c.l.b16 %v1431
    %v1472 = vunpack.c.l.b16 %v1432
    %v1473 = vunpack.c.l.b16 %v1433
    %v1474 = vunpack.c.l.b16 %v1434
    %v1475 = vunpack.c.l.b16 %v1435
    %v1476 = vpack.c.b16 %v1461, %v1460
    %v1477 = vpack.c.b16 %v1463, %v1462
    %v1478 = vpack.c.b16 %v1465, %v1464
    %v1479 = vpack.c.b16 %v1467, %v1466
    %v1480 = vpack.c.b16 %v1469, %v1468
    %v1481 = vpack.c.b16 %v1471, %v1470
    %v1482 = vpack.c.b16 %v1473, %v1472
    %v1483 = vpack.c.b16 %v1475, %v1474
    %1492 = vmatprep.subr.bf16.mxu0 0
    %1493 = vmatpush1.bf16.msra.mxu0 %v1476
    %1494 = vmatprep.subr.bf16.mxu0 0
    %1495 = vmatpush1.bf16.msra.mxu0 %v1477
    %1496 = vmatprep.subr.bf16.mxu0 0
    %1497 = vmatpush1.bf16.msra.mxu0 %v1478
    %1498 = vmatprep.subr.bf16.mxu0 0
    %1499 = vmatpush1.bf16.msra.mxu0 %v1479
    %1500 = vmatprep.subr.bf16.mxu0 0
    %1501 = vmatpush1.bf16.msra.mxu0 %v1480
    %1502 = vmatprep.subr.bf16.mxu0 0
    %1503 = vmatpush1.bf16.msra.mxu0 %v1481
    %1504 = vmatprep.subr.bf16.mxu0 0
    %1505 = vmatpush1.bf16.msra.mxu0 %v1482
    %1506 = vmatprep.subr.bf16.mxu0 0
    %1507 = vmatpush1.bf16.msra.mxu0 %v1483
    %1508 = vmatprep.subr.bf16.mxu0 0
    %1509 = vmatpush1.bf16.msra.mxu0 0
    %1510 = vmatprep.subr.bf16.mxu0 0
    %1511 = vmatpush1.bf16.msra.mxu0 0
    %1512 = vmatprep.subr.bf16.mxu0 0
    %1513 = vmatpush1.bf16.msra.mxu0 0
    %1514 = vmatprep.subr.bf16.mxu0 0
    %1515 = vmatpush1.bf16.msra.mxu0 0
    %1516 = vmatprep.subr.bf16.mxu0 0
    %1517 = vmatpush1.bf16.msra.mxu0 0
    %1518 = vmatprep.subr.bf16.mxu0 0
    %1519 = vmatpush1.bf16.msra.mxu0 0
    %1520 = vmatprep.subr.bf16.mxu0 0
    %1521 = vmatpush1.bf16.msra.mxu0 0
    %1522 = vmatprep.subr.bf16.mxu0 0
    %1523 = vmatpush1.bf16.msra.mxu0 0
    %1524 = vmatprep.mubr.bf16.mxu0 0
    %1525 = vmatmul.mubr.bf16.gmra.mrb[0].mxu0 %v1418
    %v1526 = vpop.f32.mrb[0].mxu0
    %v1527 = vadd.f32 %v1442, %v1526
    %v1528 = vpop.f32.mrb[0].mxu0
    %v1529 = vpop.f32.mrb[0].mxu0
    %v1530 = vpop.f32.mrb[0].mxu0
    %1531 = vdwg.mxu0
    %1532 = vst [vmem:[#allocation8] sm:$0xff] %v1527
    // Predicated region
    $region26: #{tpu_custom_call.1} parent=1 // pred_check
      _
    $region27: #{tpu_custom_call.1} parent=1 // pred_check_branch
      %1534 = sbr.rel (0) target = $region29
    $region28: #{tpu_custom_call.1} parent=1 // pred_region
      %s1536 = ssub.s32 128, 128
      %1537 = vsyncadd [#allocation4], %s1536
      %s1539 = sshll.u32 [#allocation8], 4
      %s1540 = int_to_ptr.vmem [resolvable:$true] %s1539
      %1542 = dma.vmem_to_hbm [thread:$0]  %s1540, 128, %s3, [#allocation4]
    $region29: #{tpu_custom_call.1} parent=1 // pred_fallthru
      _
    // Predicated region
    $region30: #{tpu_custom_call.1} parent=1 // pred_check
      _
    $region31: #{tpu_custom_call.1} parent=1 // pred_check_branch
      %1544 = sbr.rel (0) target = $region33
    $region32: #{tpu_custom_call.1} parent=1 // pred_region
      %1545 = dma.done [#allocation4], 128
    $region33: #{tpu_custom_call.1} parent=1 // pred_fallthru
      _
    %1546 = vsyncpa [#allocation3], 1
    %1547 = vsyncpa [#allocation6], 1
    %1548 = vsyncpa [#allocation4], 1

</llo_original>
